<compile_context>
chip_gen: v7x
topology: tpu7x:2x2x1
jax: 0.10.0
libtpu: 0.0.40
codegen_flags: <defaults>
</compile_context>

<pallas_src>
import functools

import jax
import jax.numpy as jnp
from jax.experimental import pallas as pl
from jax.experimental.pallas import tpu as pltpu


# ---------------------------------------------------------------------------
# Pallas kernel: fused implicit-im2col conv (single matmul) + bias + act
# ---------------------------------------------------------------------------
def _conv_act_kernel(x_ref, w_ref, b_ref, o_ref, *, tap_starts, stride,
                     activation):
    # x_ref: (Lp, Cin) flattened padded image
    # w_ref: (KH*KW*Cin, Coutp) weights, tap-major / channel-minor rows,
    #        Cout zero-padded to Coutp
    # b_ref: (1, Coutp)
    # o_ref: (H_out*Wp, Coutp) output "strip" (cols >= W_out are garbage)
    strip_rows, _ = o_ref.shape

    # Gather the KH*KW tap strips (static sublane-offset slices) and
    # lane-concatenate them into the per-image patch block.
    taps = []
    for start in tap_starts:            # static unroll over KH*KW taps
        if stride == 1:
            rows = pl.ds(start, strip_rows)
        else:
            rows = pl.ds(start, strip_rows, stride)
        taps.append(x_ref[rows, :])     # (strip_rows, Cin)
    patch = jnp.concatenate(taps, axis=-1)   # (strip_rows, KH*KW*Cin)

    # Single MXU matmul with f32 accumulation, bias fused.
    acc = jnp.dot(patch, w_ref[...], preferred_element_type=jnp.float32)
    acc = acc + b_ref[...].astype(jnp.float32)

    if activation == "relu":
        out = jnp.maximum(acc, 0.0)
    elif activation == "tanh":
        out = jnp.tanh(acc)
    else:  # leaky_relu, PyTorch default negative_slope = 0.01
        out = jnp.where(acc >= 0.0, acc, 0.01 * acc)
    o_ref[...] = out.astype(o_ref.dtype)


# ---------------------------------------------------------------------------
# Wrapper: layout plumbing + pallas_call
# ---------------------------------------------------------------------------
def conv_layer_forward(x_nchw, weight, bias, *, stride=1, padding=1,
                       dilation=1, is_seblock=False, is_last=False,
                       compute_dtype=None):
    """Forward pass of ConvLayer. x_nchw: (N, Cin, H, W); weight: (Cout, Cin, KH, KW)."""
    if is_seblock and is_last:
        activation = "relu"
    elif is_last:
        activation = "tanh"
    else:
        activation = "leaky_relu"

    n, cin, h, w = x_nchw.shape
    cout, _, kh, kw = weight.shape
    h_out = (h + 2 * padding - dilation * (kh - 1) - 1) // stride + 1
    w_out = (w + 2 * padding - dilation * (kw - 1) - 1) // stride + 1
    hp = h + 2 * padding
    wp = w + 2 * padding

    # Strip geometry: output row r = ho*wp + wo; valid columns are wo < w_out.
    strip_rows = h_out * wp
    tap_starts = tuple(i * dilation * wp + j * dilation
                       for i in range(kh) for j in range(kw))
    lp_needed = max(tap_starts) + stride * (strip_rows - 1) + 1
    extra = max(0, lp_needed - hp * wp)
    extra_h = -(-extra // wp)            # extra zero rows so strips stay in-bounds
    lp = (hp + extra_h) * wp

    # NCHW -> NHWC (interface is PyTorch NCHW), single pad pass, free flatten.
    x_nhwc = jnp.transpose(x_nchw, (0, 2, 3, 1))
    x_pad = jnp.pad(x_nhwc, ((0, 0),
                             (padding, padding + extra_h),
                             (padding, padding),
                             (0, 0)))
    x_flat = x_pad.reshape(n, lp, cin)

    # Lane-dense weights/bias: pad Cout up to a multiple of 128 with zeros.
    # Weight rows are ordered (i, j, c) = tap-major / channel-minor, matching
    # the in-kernel lane concatenation order.
    coutp = -(-cout // 128) * 128
    w_mat = jnp.transpose(weight, (2, 3, 1, 0)).reshape(kh * kw * cin, cout)
    w_mat = jnp.pad(w_mat, ((0, 0), (0, coutp - cout)))
    b_row = jnp.pad(bias, (0, coutp - cout)).reshape(1, coutp)

    if compute_dtype is not None:        # e.g. jnp.bfloat16 on v6e/v7x
        x_flat = x_flat.astype(compute_dtype)
        w_mat = w_mat.astype(compute_dtype)

    kernel = functools.partial(_conv_act_kernel, tap_starts=tap_starts,
                               stride=stride, activation=activation)

    itemsize = jnp.dtype(x_flat.dtype).itemsize
    out_itemsize = jnp.dtype(x_nchw.dtype).itemsize
    cost = pl.CostEstimate(
        flops=2 * n * h_out * w_out * kh * kw * cin * cout,
        transcendentals=(n * h_out * w_out * cout if activation == "tanh" else 0),
        bytes_accessed=(n * lp * cin * itemsize
                        + kh * kw * cin * coutp * itemsize
                        + coutp * 4
                        + n * strip_rows * coutp * out_itemsize),
    )

    out_strip = pl.pallas_call(
        kernel,
        out_shape=jax.ShapeDtypeStruct((n, strip_rows, coutp), x_nchw.dtype),
        grid_spec=pltpu.PrefetchScalarGridSpec(
            num_scalar_prefetch=0,
            grid=(n,),
            in_specs=[
                pl.BlockSpec((None, lp, cin), lambda b: (b, 0, 0)),          # image
                pl.BlockSpec((kh * kw * cin, coutp), lambda b: (0, 0)),      # weights
                pl.BlockSpec((1, coutp), lambda b: (0, 0)),                  # bias
            ],
            out_specs=pl.BlockSpec((None, strip_rows, coutp),
                                   lambda b: (b, 0, 0)),
        ),
        compiler_params=pltpu.CompilerParams(
            dimension_semantics=("parallel",)),
        cost_estimate=cost,
    )(x_flat, w_mat, b_row)

    # Drop garbage strip columns and channel padding, return NCHW.
    out = out_strip.reshape(n, h_out, wp, coutp)[:, :, :w_out, :cout]
    return jnp.transpose(out, (0, 3, 1, 2))


# ---------------------------------------------------------------------------
# Reference (pure JAX) for sanity checking
# ---------------------------------------------------------------------------
def _reference_conv_layer(x, weight, bias, *, stride, padding, dilation,
                          is_seblock, is_last):
    out = jax.lax.conv_general_dilated(
        x, weight,
        window_strides=(stride, stride),
        padding=((padding, padding), (padding, padding)),
        rhs_dilation=(dilation, dilation),
        dimension_numbers=("NCHW", "OIHW", "NCHW"),
    ) + bias.reshape(1, -1, 1, 1)
    if is_seblock and is_last:
        return jnp.maximum(out, 0.0)
    if is_last:
        return jnp.tanh(out)
    return jnp.where(out >= 0.0, out, 0.01 * out)


if __name__ == "__main__":
    # Module config: ConvLayer(in_channels=4, out_channels=8, kernel_size=3,
    #                          stride=1, padding=1, dilation=1,
    #                          is_seblock=False, is_last=False)  -> leaky_relu
    in_channels, out_channels, kernel_size = 4, 8, 3
    stride, padding, dilation = 1, 1, 1
    is_seblock, is_last = False, False

    key = jax.random.PRNGKey(0)
    kx, kw_, kb = jax.random.split(key, 3)

    x = jax.random.normal(kx, (2, in_channels, 16, 16), dtype=jnp.float32)

    # Deterministic parameter init (Conv2d-style uniform bound = 1/sqrt(fan_in)).
    fan_in = in_channels * kernel_size * kernel_size
    bound = 1.0 / (fan_in ** 0.5)
    weight = jax.random.uniform(
        kw_, (out_channels, in_channels, kernel_size, kernel_size),
        minval=-bound, maxval=bound, dtype=jnp.float32)
    bias = jax.random.uniform(
        kb, (out_channels,), minval=-bound, maxval=bound, dtype=jnp.float32)

    out = conv_layer_forward(
        x, weight, bias, stride=stride, padding=padding, dilation=dilation,
        is_seblock=is_seblock, is_last=is_last)
    out = jax.block_until_ready(out)

    ref = _reference_conv_layer(
        x, weight, bias, stride=stride, padding=padding, dilation=dilation,
        is_seblock=is_seblock, is_last=is_last)
    ref = jax.block_until_ready(ref)

    assert out.shape == (2, out_channels, 16, 16), out.shape
    assert jnp.allclose(out, ref, atol=1e-5, rtol=1e-5), float(
        jnp.max(jnp.abs(out - ref)))

    print("KERNEL_OK")
</pallas_src>

<mosaic_0001>
module attributes {stable_mosaic.version = 11 : i64} {
  func.func @_conv_act_kernel(%arg0: i32, %arg1: memref<1x342x4xf32, #tpu.memory_space<vmem>>, %arg2: memref<36x128xf32, #tpu.memory_space<vmem>>, %arg3: memref<1x128xf32, #tpu.memory_space<vmem>>, %arg4: memref<1x288x128xf32, #tpu.memory_space<vmem>>) attributes {dimension_semantics = [#tpu.dimension_semantics<parallel>], iteration_bounds = array<i64: 2>, scalar_prefetch = 0 : i64, scratch_operands = 0 : i64, tpu.core_type = #tpu.core_type<tc>, window_params = [{transform_indices = @transform_0, window_bounds = array<i64: 1, 342, 4>}, {pipeline_mode = #tpu.pipeline_mode<synchronous>, transform_indices = @transform_1, window_bounds = array<i64: 36, 128>}, {pipeline_mode = #tpu.pipeline_mode<synchronous>, transform_indices = @transform_2, window_bounds = array<i64: 1, 128>}, {transform_indices = @transform_3, window_bounds = array<i64: 1, 288, 128>}]} {
    %c0 = arith.constant 0 : index
    %c0_0 = arith.constant 0 : index
    %c0_1 = arith.constant 0 : index
    %0 = vector.load %arg1[%c0, %c0_0, %c0_1] : memref<1x342x4xf32, #tpu.memory_space<vmem>>, vector<1x288x4xf32>
    %1 = vector.shape_cast %0 : vector<1x288x4xf32> to vector<288x4xf32>
    %c0_2 = arith.constant 0 : index
    %c1 = arith.constant 1 : index
    %c0_3 = arith.constant 0 : index
    %2 = vector.load %arg1[%c0_2, %c1, %c0_3] : memref<1x342x4xf32, #tpu.memory_space<vmem>>, vector<1x288x4xf32>
    %3 = vector.shape_cast %2 : vector<1x288x4xf32> to vector<288x4xf32>
    %c0_4 = arith.constant 0 : index
    %c2 = arith.constant 2 : index
    %c0_5 = arith.constant 0 : index
    %4 = vector.load %arg1[%c0_4, %c2, %c0_5] : memref<1x342x4xf32, #tpu.memory_space<vmem>>, vector<1x288x4xf32>
    %5 = vector.shape_cast %4 : vector<1x288x4xf32> to vector<288x4xf32>
    %c0_6 = arith.constant 0 : index
    %c18 = arith.constant 18 : index
    %c0_7 = arith.constant 0 : index
    %6 = vector.load %arg1[%c0_6, %c18, %c0_7] : memref<1x342x4xf32, #tpu.memory_space<vmem>>, vector<1x288x4xf32>
    %7 = vector.shape_cast %6 : vector<1x288x4xf32> to vector<288x4xf32>
    %c0_8 = arith.constant 0 : index
    %c19 = arith.constant 19 : index
    %c0_9 = arith.constant 0 : index
    %8 = vector.load %arg1[%c0_8, %c19, %c0_9] : memref<1x342x4xf32, #tpu.memory_space<vmem>>, vector<1x288x4xf32>
    %9 = vector.shape_cast %8 : vector<1x288x4xf32> to vector<288x4xf32>
    %c0_10 = arith.constant 0 : index
    %c20 = arith.constant 20 : index
    %c0_11 = arith.constant 0 : index
    %10 = vector.load %arg1[%c0_10, %c20, %c0_11] : memref<1x342x4xf32, #tpu.memory_space<vmem>>, vector<1x288x4xf32>
    %11 = vector.shape_cast %10 : vector<1x288x4xf32> to vector<288x4xf32>
    %c0_12 = arith.constant 0 : index
    %c36 = arith.constant 36 : index
    %c0_13 = arith.constant 0 : index
    %12 = vector.load %arg1[%c0_12, %c36, %c0_13] : memref<1x342x4xf32, #tpu.memory_space<vmem>>, vector<1x288x4xf32>
    %13 = vector.shape_cast %12 : vector<1x288x4xf32> to vector<288x4xf32>
    %c0_14 = arith.constant 0 : index
    %c37 = arith.constant 37 : index
    %c0_15 = arith.constant 0 : index
    %14 = vector.load %arg1[%c0_14, %c37, %c0_15] : memref<1x342x4xf32, #tpu.memory_space<vmem>>, vector<1x288x4xf32>
    %15 = vector.shape_cast %14 : vector<1x288x4xf32> to vector<288x4xf32>
    %c0_16 = arith.constant 0 : index
    %c38 = arith.constant 38 : index
    %c0_17 = arith.constant 0 : index
    %16 = vector.load %arg1[%c0_16, %c38, %c0_17] : memref<1x342x4xf32, #tpu.memory_space<vmem>>, vector<1x288x4xf32>
    %17 = vector.shape_cast %16 : vector<1x288x4xf32> to vector<288x4xf32>
    %18 = tpu.concatenate %1, %3, %5, %7, %9, %11, %13, %15, %17 in 1 : vector<288x4xf32>, vector<288x4xf32>, vector<288x4xf32>, vector<288x4xf32>, vector<288x4xf32>, vector<288x4xf32>, vector<288x4xf32>, vector<288x4xf32>, vector<288x4xf32> -> vector<288x36xf32>
    %c0_18 = arith.constant 0 : index
    %c0_19 = arith.constant 0 : index
    %19 = vector.load %arg2[%c0_18, %c0_19] : memref<36x128xf32, #tpu.memory_space<vmem>>, vector<36x128xf32>
    %cst = arith.constant dense<0.000000e+00> : vector<288x128xf32>
    %20 = tpu.matmul %18, %19, %cst {dimension_numbers = #tpu.dot_dimension_numbers<[1], [0], [0], [1], [0, 0, 1, 1], [], []>} : vector<288x36xf32>, vector<36x128xf32>, vector<288x128xf32> -> vector<288x128xf32>
    %c0_20 = arith.constant 0 : index
    %c0_21 = arith.constant 0 : index
    %21 = vector.load %arg3[%c0_20, %c0_21] : memref<1x128xf32, #tpu.memory_space<vmem>>, vector<1x128xf32>
    %22 = vector.broadcast %21 : vector<1x128xf32> to vector<288x128xf32>
    %23 = arith.addf %20, %22 : vector<288x128xf32>
    %cst_22 = arith.constant 0.000000e+00 : f32
    %24 = vector.broadcast %cst_22 : f32 to vector<288x128xf32>
    %25 = arith.cmpf oge, %23, %24 : vector<288x128xf32>
    %cst_23 = arith.constant 0.00999999977 : f32
    %26 = vector.broadcast %cst_23 : f32 to vector<288x128xf32>
    %27 = arith.mulf %26, %23 : vector<288x128xf32>
    %28 = arith.select %25, %23, %27 : vector<288x128xi1>, vector<288x128xf32>
    %c0_24 = arith.constant 0 : index
    %c0_25 = arith.constant 0 : index
    %c0_26 = arith.constant 0 : index
    %29 = vector.load %arg4[%c0_24, %c0_25, %c0_26] : memref<1x288x128xf32, #tpu.memory_space<vmem>>, vector<1x288x128xf32>
    %30 = vector.shape_cast %29 : vector<1x288x128xf32> to vector<288x128xf32>
    %31 = vector.shape_cast %28 : vector<288x128xf32> to vector<1x288x128xf32>
    tpu.vector_store %arg4[%c0_24, %c0_25, %c0_26], %31 {strides = array<i32>} : memref<1x288x128xf32, #tpu.memory_space<vmem>>, vector<1x288x128xf32>,
    return
  }
  func.func @transform_0(%arg0: i32) -> (i32, i32, i32) {
    %c0_i32 = arith.constant 0 : i32
    %c0_i32_0 = arith.constant 0 : i32
    %c0_i32_1 = arith.constant 0 : i32
    return %arg0, %c0_i32, %c0_i32_0 : i32, i32, i32
  }
  func.func @transform_1(%arg0: i32) -> (i32, i32) {
    %c0_i32 = arith.constant 0 : i32
    %c0_i32_0 = arith.constant 0 : i32
    %c0_i32_1 = arith.constant 0 : i32
    return %c0_i32, %c0_i32_0 : i32, i32
  }
  func.func @transform_2(%arg0: i32) -> (i32, i32) {
    %c0_i32 = arith.constant 0 : i32
    %c0_i32_0 = arith.constant 0 : i32
    %c0_i32_1 = arith.constant 0 : i32
    return %c0_i32, %c0_i32_0 : i32, i32
  }
  func.func @transform_3(%arg0: i32) -> (i32, i32, i32) {
    %c0_i32 = arith.constant 0 : i32
    %c0_i32_0 = arith.constant 0 : i32
    %c0_i32_1 = arith.constant 0 : i32
    return %arg0, %c0_i32, %c0_i32_0 : i32, i32, i32
  }
}

</mosaic_0001>

<llo_original>
// kernel: tpu_custom_call.1
$region0: #{tpu_custom_call.1}
  #allocation0 [shape = 'u32[]', space=smem, size = 0x4, offset = 0x4, fixed_abs, tag = 'smem constant byte address 0x4 - core index']
  #allocation1 [shape = 'u32[144,128]{1,0:T(1,128)}', space=vmem, size = 0x12000, scoped, tag = 'internal scratch']
  %s0 = inlined_call_operand.vmem [shape: f32[2,342,4], index: 0, kind: input, shape index: {}]
  %s1 = inlined_call_operand.vmem [shape: f32[36,128], index: 1, kind: input, shape index: {}]
  %s2 = inlined_call_operand.vmem [shape: f32[1,128], index: 2, kind: input, shape index: {}]
  %s3 = inlined_call_operand.hbm [shape: f32[2,288,128], index: 3, kind: output, shape index: {}]
  %s4 = sld [smem:[#allocation0]]
  $region45: #{tpu_custom_call.1} parent=0
    _
  %s6 = ssub.s32 1, %s4
  %s7 = scalar_select 0, %s6, %s4
  $region1: #{tpu_custom_call.1} parent=0
    #allocation2 [shape = 'u8[294912]{0}', space=vmem, size = 0x48000, scoped, tag = 'output window, operand 0']
    #allocation3 [shape = 's32[2]{0}', space=sflag, size = 0x8, scoped, tag = 'scoped memory for tpu_custom_call.1']
    %8 = vsyncpa [#allocation3], 0
    %s9 = scalar_lea.sflag [#allocation3], 1
    %10 = vsyncpa %s9, 0
    loop: start=0, step=1, limit=4
    $region2: #{tpu_custom_call.1} parent=1 // loop_pre_header
      _
    $region3: #{tpu_custom_call.1} parent=1 // loop_header
      %s12 = sphi 0, %s16
      %p13 = scmp.ge.s32.totalorder %s12, 4
      %s22 = sphi 0, %s24
      %s25 = sphi 0, %s22
      %s26 = sphi 0, %s25
      %s42 = sphi 0, %s26
      %s46 = sphi 0, %s46
      %s48 = sphi 0, %s46
      %s49 = sphi 0, %s48
      %s63 = sphi 0, %s49
      %s67 = sphi 0, %s67
      %s69 = sphi 0, %s67
      %s70 = sphi 0, %s69
      %s84 = sphi 0, %s70
      %s90 = sphi 0, %s92
      %s93 = sphi 0, %s90
      %s94 = sphi 0, %s93
      %s110 = sphi 0, %s94
    $region4: #{tpu_custom_call.1} parent=1 // loop_header_branch
      %15 = sbr.rel (%p13) target = $region8
    $region5: #{tpu_custom_call.1} parent=1 // loop_body
      %s17 = ssub.s32 %s12, 1
      %s18 = ssub.s32 %s12, 2
      %s19 = sadd.s32 %s12, 1
      %s20 = ssub.s32 %s12, %s19
      %p21 = scmp.eq.s32.totalorder %s20, 0
      %s23 = sadd.s32 %s22, 1
      %s24 = scalar_select %p21, %s22, %s23
      %p27 = pneg %p21
      %p28 = scmp.eq.s32.totalorder %s12, 1
      %p29 = por %p27, %p28
      %p30 = scmp.ne.s32.totalorder %s22, %s25
      %p31 = scmp.eq.s32.totalorder %s12, 0
      %p32 = por %p30, %p31
      %p33 = scmp.ne.s32.totalorder %s22, %s25
      %p34 = scmp.eq.s32.totalorder %s17, 1
      %p35 = por %p33, %p34
      %p36 = scmp.ne.s32.totalorder %s25, %s26
      %p37 = scmp.eq.s32.totalorder %s17, 0
      %p38 = por %p36, %p37
      %p39 = scmp.ne.s32.totalorder %s25, %s26
      %p40 = scmp.eq.s32.totalorder %s18, 1
      %p41 = por %p39, %p40
      %p43 = scmp.ne.s32.totalorder %s26, %s42
      %p44 = scmp.eq.s32.totalorder %s18, 0
      %p45 = por %p43, %p44
      %s47 = sadd.s32 %s46, 1
      %p50 = scmp.eq.s32.totalorder %s12, 1
      %p51 = scmp.ne.s32.totalorder %s46, %s48
      %p52 = scmp.eq.s32.totalorder %s12, 0
      %p53 = por %p51, %p52
      %p54 = scmp.ne.s32.totalorder %s46, %s48
      %p55 = scmp.eq.s32.totalorder %s17, 1
      %p56 = por %p54, %p55
      %p57 = scmp.ne.s32.totalorder %s48, %s49
      %p58 = scmp.eq.s32.totalorder %s17, 0
      %p59 = por %p57, %p58
      %p60 = scmp.ne.s32.totalorder %s48, %s49
      %p61 = scmp.eq.s32.totalorder %s18, 1
      %p62 = por %p60, %p61
      %p64 = scmp.ne.s32.totalorder %s49, %s63
      %p65 = scmp.eq.s32.totalorder %s18, 0
      %p66 = por %p64, %p65
      %s68 = sadd.s32 %s67, 1
      %p71 = scmp.eq.s32.totalorder %s12, 1
      %p72 = scmp.ne.s32.totalorder %s67, %s69
      %p73 = scmp.eq.s32.totalorder %s12, 0
      %p74 = por %p72, %p73
      %p75 = scmp.ne.s32.totalorder %s67, %s69
      %p76 = scmp.eq.s32.totalorder %s17, 1
      %p77 = por %p75, %p76
      %p78 = scmp.ne.s32.totalorder %s69, %s70
      %p79 = scmp.eq.s32.totalorder %s17, 0
      %p80 = por %p78, %p79
      %p81 = scmp.ne.s32.totalorder %s69, %s70
      %p82 = scmp.eq.s32.totalorder %s18, 1
      %p83 = por %p81, %p82
      %p85 = scmp.ne.s32.totalorder %s70, %s84
      %p86 = scmp.eq.s32.totalorder %s18, 0
      %p87 = por %p85, %p86
      %s88 = ssub.s32 %s12, %s19
      %p89 = scmp.eq.s32.totalorder %s88, 0
      %s91 = sadd.s32 %s90, 1
      %s92 = scalar_select %p89, %s90, %s91
      %p95 = pneg %p89
      %p96 = scmp.eq.s32.totalorder %s12, 1
      %p97 = por %p95, %p96
      %p98 = scmp.ne.s32.totalorder %s90, %s93
      %p99 = scmp.eq.s32.totalorder %s12, 0
      %p100 = por %p98, %p99
      %p101 = scmp.ne.s32.totalorder %s90, %s93
      %p102 = scmp.eq.s32.totalorder %s17, 1
      %p103 = por %p101, %p102
      %p104 = scmp.ne.s32.totalorder %s93, %s94
      %p105 = scmp.eq.s32.totalorder %s17, 0
      %p106 = por %p104, %p105
      %p107 = scmp.ne.s32.totalorder %s93, %s94
      %p108 = scmp.eq.s32.totalorder %s18, 1
      %p109 = por %p107, %p108
      %p111 = scmp.ne.s32.totalorder %s94, %s110
      %p112 = scmp.eq.s32.totalorder %s18, 0
      %p113 = por %p111, %p112
      %p114 = scmp.le.s32.totalorder 1, %s12
      %p115 = scmp.lt.s32.totalorder %s12, 3
      %p116 = pnand %p114, %p115
      %p117 = pneg %p116
      // Predicated region
      $region9: #{tpu_custom_call.1} parent=5 // pred_check
        _
      $region10: #{tpu_custom_call.1} parent=5 // pred_check_branch
        %119 = sbr.rel (%p116) target = $region12
      $region11: #{tpu_custom_call.1} parent=5 // pred_region
        %s120 = ssub.s32 %s12, 1
        // Predicated region
        $region13: #{tpu_custom_call.1} parent=11 // pred_check
          %p121 = pneg %p59
        $region14: #{tpu_custom_call.1} parent=11 // pred_check_branch
          %123 = sbr.rel (%p121) target = $region16
        $region15: #{tpu_custom_call.1} parent=11 // pred_region
          _
        $region16: #{tpu_custom_call.1} parent=11 // pred_fallthru
          _
        // Predicated region
        $region17: #{tpu_custom_call.1} parent=11 // pred_check
          %p124 = pneg %p80
        $region18: #{tpu_custom_call.1} parent=11 // pred_check_branch
          %126 = sbr.rel (%p124) target = $region20
        $region19: #{tpu_custom_call.1} parent=11 // pred_region
          _
        $region20: #{tpu_custom_call.1} parent=11 // pred_fallthru
          _
      $region12: #{tpu_custom_call.1} parent=5 // pred_fallthru
        _
      %p127 = scmp.lt.s32.totalorder %s12, 2
      // Predicated region
      $region21: #{tpu_custom_call.1} parent=5 // pred_check
        %p128 = pneg %p127
      $region22: #{tpu_custom_call.1} parent=5 // pred_check_branch
        %130 = sbr.rel (%p128) target = $region24
      $region23: #{tpu_custom_call.1} parent=5 // pred_region
        // Predicated region
        $region25: #{tpu_custom_call.1} parent=23 // pred_check
          %p131 = pneg %p32
        $region26: #{tpu_custom_call.1} parent=23 // pred_check_branch
          %133 = sbr.rel (%p131) target = $region28
        $region27: #{tpu_custom_call.1} parent=23 // pred_region
          %p134 = scmp.lt.s32.totalorder %s12, 1
          %s135 = scalar_select %p134, %s12, 1
          %s136 = smul.addr %s135, 43
          %s137 = smul.addr %s136, 8
          %s138 = scalar_lea.vmem %s0, %s137
        $region28: #{tpu_custom_call.1} parent=23 // pred_fallthru
          _
      $region24: #{tpu_custom_call.1} parent=5 // pred_fallthru
        _
      %p139 = scmp.le.s32.totalorder 1, %s12
      %p140 = scmp.lt.s32.totalorder %s12, 3
      %p141 = pnand %p139, %p140
      %p142 = pneg %p141
      // Predicated region
      $region29: #{tpu_custom_call.1} parent=5 // pred_check
        _
      $region30: #{tpu_custom_call.1} parent=5 // pred_check_branch
        %144 = sbr.rel (%p141) target = $region32
      $region31: #{tpu_custom_call.1} parent=5 // pred_region
        %s145 = ssub.s32 %s12, 1
        %p146 = scmp.lt.s32.totalorder %s17, 1
        %s147 = scalar_select %p146, %s17, 1
        %s148 = smul.addr %s147, 43
        %s149 = smul.addr %s148, 8
        %s150 = scalar_lea.vmem %s0, %s149
        %p151 = pneg %p38
        %p152 = pneg %p35
        %p153 = pneg %p59
        %p154 = pneg %p56
        %p155 = pneg %p80
        %p156 = pneg %p77
        %p157 = pneg %p106
        %p158 = pneg %p103
        %s159 = sand.u32 %s93, 1
        %s160 = scalar_lea.sflag [#allocation3], %s159
        %s161 = sand.u32 %s93, 1
        %s162 = smul.addr %s161, 288
        %s163 = scalar_lea.vmem [#allocation2], %s162
        %p164 = scmp.lt.s32.totalorder %s17, 1
        %s165 = scalar_select %p164, %s17, 1
        %s166 = smul.addr %s165, 43
        %s167 = smul.addr %s166, 8
        %s168 = scalar_lea.vmem %s0, %s167
        %v169 = vld [vmem:[%s168] sm:$0xff]
        %v170 = vld [vmem:[%s168 + $0x8] sm:$0xff]
        %v171 = vld [vmem:[%s168 + $0x10] sm:$0xff]
        %v172 = vld [vmem:[%s168 + $0x18] sm:$0xff]
        %v173 = vld [vmem:[%s168 + $0x20] sm:$0xff]
        %v174 = vld [vmem:[%s168 + $0x28] sm:$0xff]
        %v175 = vld [vmem:[%s168 + $0x30] sm:$0xff]
        %v176 = vld [vmem:[%s168 + $0x38] sm:$0xff]
        %v177 = vld [vmem:[%s168 + $0x40] sm:$0xff]
        %v178 = vld [vmem:[%s168 + $0x48] sm:$0xff]
        %v179 = vld [vmem:[%s168 + $0x50] sm:$0xff]
        %v180 = vld [vmem:[%s168 + $0x58] sm:$0xff]
        %v181 = vld [vmem:[%s168 + $0x60] sm:$0xff]
        %v182 = vld [vmem:[%s168 + $0x68] sm:$0xff]
        %v183 = vld [vmem:[%s168 + $0x70] sm:$0xff]
        %v184 = vld [vmem:[%s168 + $0x78] sm:$0xff]
        %v185 = vld [vmem:[%s168 + $0x80] sm:$0xff]
        %v186 = vld [vmem:[%s168 + $0x88] sm:$0xff]
        %v187 = vld [vmem:[%s168 + $0x90] sm:$0xff]
        %v188 = vld [vmem:[%s168 + $0x98] sm:$0xff]
        %v189 = vld [vmem:[%s168 + $0xa0] sm:$0xff]
        %v190 = vld [vmem:[%s168 + $0xa8] sm:$0xff]
        %v191 = vld [vmem:[%s168 + $0xb0] sm:$0xff]
        %v192 = vld [vmem:[%s168 + $0xb8] sm:$0xff]
        %v193 = vld [vmem:[%s168 + $0xc0] sm:$0xff]
        %v194 = vld [vmem:[%s168 + $0xc8] sm:$0xff]
        %v195 = vld [vmem:[%s168 + $0xd0] sm:$0xff]
        %v196 = vld [vmem:[%s168 + $0xd8] sm:$0xff]
        %v197 = vld [vmem:[%s168 + $0xe0] sm:$0xff]
        %v198 = vld [vmem:[%s168 + $0xe8] sm:$0xff]
        %v199 = vld [vmem:[%s168 + $0xf0] sm:$0xff]
        %v200 = vld [vmem:[%s168 + $0xf8] sm:$0xff]
        %v201 = vld [vmem:[%s168 + $0x100] sm:$0xff]
        %v202 = vld [vmem:[%s168 + $0x108] sm:$0xff]
        %v203 = vld [vmem:[%s168 + $0x110] sm:$0xff]
        %v204 = vld [vmem:[%s168 + $0x118] sm:$0xff]
        %v205 = vld [vmem:[%s168 + $0x1] sm:$0xff]
        %v206 = vld [vmem:[%s168 + $0x9] sm:$0xff]
        %v207 = vld [vmem:[%s168 + $0x11] sm:$0xff]
        %v208 = vld [vmem:[%s168 + $0x19] sm:$0xff]
        %v209 = vld [vmem:[%s168 + $0x21] sm:$0xff]
        %v210 = vld [vmem:[%s168 + $0x29] sm:$0xff]
        %v211 = vld [vmem:[%s168 + $0x31] sm:$0xff]
        %v212 = vld [vmem:[%s168 + $0x39] sm:$0xff]
        %v213 = vld [vmem:[%s168 + $0x41] sm:$0xff]
        %v214 = vld [vmem:[%s168 + $0x49] sm:$0xff]
        %v215 = vld [vmem:[%s168 + $0x51] sm:$0xff]
        %v216 = vld [vmem:[%s168 + $0x59] sm:$0xff]
        %v217 = vld [vmem:[%s168 + $0x61] sm:$0xff]
        %v218 = vld [vmem:[%s168 + $0x69] sm:$0xff]
        %v219 = vld [vmem:[%s168 + $0x71] sm:$0xff]
        %v220 = vld [vmem:[%s168 + $0x79] sm:$0xff]
        %v221 = vld [vmem:[%s168 + $0x81] sm:$0xff]
        %v222 = vld [vmem:[%s168 + $0x89] sm:$0xff]
        %v223 = vld [vmem:[%s168 + $0x91] sm:$0xff]
        %v224 = vld [vmem:[%s168 + $0x99] sm:$0xff]
        %v225 = vld [vmem:[%s168 + $0xa1] sm:$0xff]
        %v226 = vld [vmem:[%s168 + $0xa9] sm:$0xff]
        %v227 = vld [vmem:[%s168 + $0xb1] sm:$0xff]
        %v228 = vld [vmem:[%s168 + $0xb9] sm:$0xff]
        %v229 = vld [vmem:[%s168 + $0xc1] sm:$0xff]
        %v230 = vld [vmem:[%s168 + $0xc9] sm:$0xff]
        %v231 = vld [vmem:[%s168 + $0xd1] sm:$0xff]
        %v232 = vld [vmem:[%s168 + $0xd9] sm:$0xff]
        %v233 = vld [vmem:[%s168 + $0xe1] sm:$0xff]
        %v234 = vld [vmem:[%s168 + $0xe9] sm:$0xff]
        %v235 = vld [vmem:[%s168 + $0xf1] sm:$0xff]
        %v236 = vld [vmem:[%s168 + $0xf9] sm:$0xff]
        %v237 = vld [vmem:[%s168 + $0x101] sm:$0xff]
        %v238 = vld [vmem:[%s168 + $0x109] sm:$0xff]
        %v239 = vld [vmem:[%s168 + $0x111] sm:$0xff]
        %v240 = vld [vmem:[%s168 + $0x119] sm:$0xff]
        %v241 = vld [vmem:[%s168 + $0x2] sm:$0xff]
        %v242 = vld [vmem:[%s168 + $0xa] sm:$0xff]
        %v243 = vld [vmem:[%s168 + $0x12] sm:$0xff]
        %v244 = vld [vmem:[%s168 + $0x1a] sm:$0xff]
        %v245 = vld [vmem:[%s168 + $0x22] sm:$0xff]
        %v246 = vld [vmem:[%s168 + $0x2a] sm:$0xff]
        %v247 = vld [vmem:[%s168 + $0x32] sm:$0xff]
        %v248 = vld [vmem:[%s168 + $0x3a] sm:$0xff]
        %v249 = vld [vmem:[%s168 + $0x42] sm:$0xff]
        %v250 = vld [vmem:[%s168 + $0x4a] sm:$0xff]
        %v251 = vld [vmem:[%s168 + $0x52] sm:$0xff]
        %v252 = vld [vmem:[%s168 + $0x5a] sm:$0xff]
        %v253 = vld [vmem:[%s168 + $0x62] sm:$0xff]
        %v254 = vld [vmem:[%s168 + $0x6a] sm:$0xff]
        %v255 = vld [vmem:[%s168 + $0x72] sm:$0xff]
        %v256 = vld [vmem:[%s168 + $0x7a] sm:$0xff]
        %v257 = vld [vmem:[%s168 + $0x82] sm:$0xff]
        %v258 = vld [vmem:[%s168 + $0x8a] sm:$0xff]
        %v259 = vld [vmem:[%s168 + $0x92] sm:$0xff]
        %v260 = vld [vmem:[%s168 + $0x9a] sm:$0xff]
        %v261 = vld [vmem:[%s168 + $0xa2] sm:$0xff]
        %v262 = vld [vmem:[%s168 + $0xaa] sm:$0xff]
        %v263 = vld [vmem:[%s168 + $0xb2] sm:$0xff]
        %v264 = vld [vmem:[%s168 + $0xba] sm:$0xff]
        %v265 = vld [vmem:[%s168 + $0xc2] sm:$0xff]
        %v266 = vld [vmem:[%s168 + $0xca] sm:$0xff]
        %v267 = vld [vmem:[%s168 + $0xd2] sm:$0xff]
        %v268 = vld [vmem:[%s168 + $0xda] sm:$0xff]
        %v269 = vld [vmem:[%s168 + $0xe2] sm:$0xff]
        %v270 = vld [vmem:[%s168 + $0xea] sm:$0xff]
        %v271 = vld [vmem:[%s168 + $0xf2] sm:$0xff]
        %v272 = vld [vmem:[%s168 + $0xfa] sm:$0xff]
        %v273 = vld [vmem:[%s168 + $0x102] sm:$0xff]
        %v274 = vld [vmem:[%s168 + $0x10a] sm:$0xff]
        %v275 = vld [vmem:[%s168 + $0x112] sm:$0xff]
        %v276 = vld [vmem:[%s168 + $0x11a] sm:$0xff]
        %v277 = vld [vmem:[%s168 + $0x122] sm:$0xff]
        %v278 = vld [vmem:[%s168 + $0x12a] sm:$0xff]
        %v279 = vld [vmem:[%s168 + $0x13] sm:$0xff]
        %v280 = vld [vmem:[%s168 + $0x1b] sm:$0xff]
        %v281 = vld [vmem:[%s168 + $0x23] sm:$0xff]
        %v282 = vld [vmem:[%s168 + $0x2b] sm:$0xff]
        %v283 = vld [vmem:[%s168 + $0x33] sm:$0xff]
        %v284 = vld [vmem:[%s168 + $0x3b] sm:$0xff]
        %v285 = vld [vmem:[%s168 + $0x43] sm:$0xff]
        %v286 = vld [vmem:[%s168 + $0x4b] sm:$0xff]
        %v287 = vld [vmem:[%s168 + $0x53] sm:$0xff]
        %v288 = vld [vmem:[%s168 + $0x5b] sm:$0xff]
        %v289 = vld [vmem:[%s168 + $0x63] sm:$0xff]
        %v290 = vld [vmem:[%s168 + $0x6b] sm:$0xff]
        %v291 = vld [vmem:[%s168 + $0x73] sm:$0xff]
        %v292 = vld [vmem:[%s168 + $0x7b] sm:$0xff]
        %v293 = vld [vmem:[%s168 + $0x83] sm:$0xff]
        %v294 = vld [vmem:[%s168 + $0x8b] sm:$0xff]
        %v295 = vld [vmem:[%s168 + $0x93] sm:$0xff]
        %v296 = vld [vmem:[%s168 + $0x9b] sm:$0xff]
        %v297 = vld [vmem:[%s168 + $0xa3] sm:$0xff]
        %v298 = vld [vmem:[%s168 + $0xab] sm:$0xff]
        %v299 = vld [vmem:[%s168 + $0xb3] sm:$0xff]
        %v300 = vld [vmem:[%s168 + $0xbb] sm:$0xff]
        %v301 = vld [vmem:[%s168 + $0xc3] sm:$0xff]
        %v302 = vld [vmem:[%s168 + $0xcb] sm:$0xff]
        %v303 = vld [vmem:[%s168 + $0xd3] sm:$0xff]
        %v304 = vld [vmem:[%s168 + $0xdb] sm:$0xff]
        %v305 = vld [vmem:[%s168 + $0xe3] sm:$0xff]
        %v306 = vld [vmem:[%s168 + $0xeb] sm:$0xff]
        %v307 = vld [vmem:[%s168 + $0xf3] sm:$0xff]
        %v308 = vld [vmem:[%s168 + $0xfb] sm:$0xff]
        %v309 = vld [vmem:[%s168 + $0x103] sm:$0xff]
        %v310 = vld [vmem:[%s168 + $0x10b] sm:$0xff]
        %v311 = vld [vmem:[%s168 + $0x113] sm:$0xff]
        %v312 = vld [vmem:[%s168 + $0x11b] sm:$0xff]
        %v313 = vld [vmem:[%s168 + $0x123] sm:$0xff]
        %v314 = vld [vmem:[%s168 + $0x12b] sm:$0xff]
        %v315 = vld [vmem:[%s168 + $0x14] sm:$0xff]
        %v316 = vld [vmem:[%s168 + $0x1c] sm:$0xff]
        %v317 = vld [vmem:[%s168 + $0x24] sm:$0xff]
        %v318 = vld [vmem:[%s168 + $0x2c] sm:$0xff]
        %v319 = vld [vmem:[%s168 + $0x34] sm:$0xff]
        %v320 = vld [vmem:[%s168 + $0x3c] sm:$0xff]
        %v321 = vld [vmem:[%s168 + $0x44] sm:$0xff]
        %v322 = vld [vmem:[%s168 + $0x4c] sm:$0xff]
        %v323 = vld [vmem:[%s168 + $0x54] sm:$0xff]
        %v324 = vld [vmem:[%s168 + $0x5c] sm:$0xff]
        %v325 = vld [vmem:[%s168 + $0x64] sm:$0xff]
        %v326 = vld [vmem:[%s168 + $0x6c] sm:$0xff]
        %v327 = vld [vmem:[%s168 + $0x74] sm:$0xff]
        %v328 = vld [vmem:[%s168 + $0x7c] sm:$0xff]
        %v329 = vld [vmem:[%s168 + $0x84] sm:$0xff]
        %v330 = vld [vmem:[%s168 + $0x8c] sm:$0xff]
        %v331 = vld [vmem:[%s168 + $0x94] sm:$0xff]
        %v332 = vld [vmem:[%s168 + $0x9c] sm:$0xff]
        %v333 = vld [vmem:[%s168 + $0xa4] sm:$0xff]
        %v334 = vld [vmem:[%s168 + $0xac] sm:$0xff]
        %v335 = vld [vmem:[%s168 + $0xb4] sm:$0xff]
        %v336 = vld [vmem:[%s168 + $0xbc] sm:$0xff]
        %v337 = vld [vmem:[%s168 + $0xc4] sm:$0xff]
        %v338 = vld [vmem:[%s168 + $0xcc] sm:$0xff]
        %v339 = vld [vmem:[%s168 + $0xd4] sm:$0xff]
        %v340 = vld [vmem:[%s168 + $0xdc] sm:$0xff]
        %v341 = vld [vmem:[%s168 + $0xe4] sm:$0xff]
        %v342 = vld [vmem:[%s168 + $0xec] sm:$0xff]
        %v343 = vld [vmem:[%s168 + $0xf4] sm:$0xff]
        %v344 = vld [vmem:[%s168 + $0xfc] sm:$0xff]
        %v345 = vld [vmem:[%s168 + $0x104] sm:$0xff]
        %v346 = vld [vmem:[%s168 + $0x10c] sm:$0xff]
        %v347 = vld [vmem:[%s168 + $0x114] sm:$0xff]
        %v348 = vld [vmem:[%s168 + $0x11c] sm:$0xff]
        %v349 = vld [vmem:[%s168 + $0x124] sm:$0xff]
        %v350 = vld [vmem:[%s168 + $0x12c] sm:$0xff]
        %v351 = vld [vmem:[%s168 + $0x134] sm:$0xff]
        %v352 = vld [vmem:[%s168 + $0x13c] sm:$0xff]
        %v353 = vld [vmem:[%s168 + $0x25] sm:$0xff]
        %v354 = vld [vmem:[%s168 + $0x2d] sm:$0xff]
        %v355 = vld [vmem:[%s168 + $0x35] sm:$0xff]
        %v356 = vld [vmem:[%s168 + $0x3d] sm:$0xff]
        %v357 = vld [vmem:[%s168 + $0x45] sm:$0xff]
        %v358 = vld [vmem:[%s168 + $0x4d] sm:$0xff]
        %v359 = vld [vmem:[%s168 + $0x55] sm:$0xff]
        %v360 = vld [vmem:[%s168 + $0x5d] sm:$0xff]
        %v361 = vld [vmem:[%s168 + $0x65] sm:$0xff]
        %v362 = vld [vmem:[%s168 + $0x6d] sm:$0xff]
        %v363 = vld [vmem:[%s168 + $0x75] sm:$0xff]
        %v364 = vld [vmem:[%s168 + $0x7d] sm:$0xff]
        %v365 = vld [vmem:[%s168 + $0x85] sm:$0xff]
        %v366 = vld [vmem:[%s168 + $0x8d] sm:$0xff]
        %v367 = vld [vmem:[%s168 + $0x95] sm:$0xff]
        %v368 = vld [vmem:[%s168 + $0x9d] sm:$0xff]
        %v369 = vld [vmem:[%s168 + $0xa5] sm:$0xff]
        %v370 = vld [vmem:[%s168 + $0xad] sm:$0xff]
        %v371 = vld [vmem:[%s168 + $0xb5] sm:$0xff]
        %v372 = vld [vmem:[%s168 + $0xbd] sm:$0xff]
        %v373 = vld [vmem:[%s168 + $0xc5] sm:$0xff]
        %v374 = vld [vmem:[%s168 + $0xcd] sm:$0xff]
        %v375 = vld [vmem:[%s168 + $0xd5] sm:$0xff]
        %v376 = vld [vmem:[%s168 + $0xdd] sm:$0xff]
        %v377 = vld [vmem:[%s168 + $0xe5] sm:$0xff]
        %v378 = vld [vmem:[%s168 + $0xed] sm:$0xff]
        %v379 = vld [vmem:[%s168 + $0xf5] sm:$0xff]
        %v380 = vld [vmem:[%s168 + $0xfd] sm:$0xff]
        %v381 = vld [vmem:[%s168 + $0x105] sm:$0xff]
        %v382 = vld [vmem:[%s168 + $0x10d] sm:$0xff]
        %v383 = vld [vmem:[%s168 + $0x115] sm:$0xff]
        %v384 = vld [vmem:[%s168 + $0x11d] sm:$0xff]
        %v385 = vld [vmem:[%s168 + $0x125] sm:$0xff]
        %v386 = vld [vmem:[%s168 + $0x12d] sm:$0xff]
        %v387 = vld [vmem:[%s168 + $0x135] sm:$0xff]
        %v388 = vld [vmem:[%s168 + $0x13d] sm:$0xff]
        %v389 = vld [vmem:[%s168 + $0x26] sm:$0xff]
        %v390 = vld [vmem:[%s168 + $0x2e] sm:$0xff]
        %v391 = vld [vmem:[%s168 + $0x36] sm:$0xff]
        %v392 = vld [vmem:[%s168 + $0x3e] sm:$0xff]
        %v393 = vld [vmem:[%s168 + $0x46] sm:$0xff]
        %v394 = vld [vmem:[%s168 + $0x4e] sm:$0xff]
        %v395 = vld [vmem:[%s168 + $0x56] sm:$0xff]
        %v396 = vld [vmem:[%s168 + $0x5e] sm:$0xff]
        %v397 = vld [vmem:[%s168 + $0x66] sm:$0xff]
        %v398 = vld [vmem:[%s168 + $0x6e] sm:$0xff]
        %v399 = vld [vmem:[%s168 + $0x76] sm:$0xff]
        %v400 = vld [vmem:[%s168 + $0x7e] sm:$0xff]
        %v401 = vld [vmem:[%s168 + $0x86] sm:$0xff]
        %v402 = vld [vmem:[%s168 + $0x8e] sm:$0xff]
        %v403 = vld [vmem:[%s168 + $0x96] sm:$0xff]
        %v404 = vld [vmem:[%s168 + $0x9e] sm:$0xff]
        %v405 = vld [vmem:[%s168 + $0xa6] sm:$0xff]
        %v406 = vld [vmem:[%s168 + $0xae] sm:$0xff]
        %v407 = vld [vmem:[%s168 + $0xb6] sm:$0xff]
        %v408 = vld [vmem:[%s168 + $0xbe] sm:$0xff]
        %v409 = vld [vmem:[%s168 + $0xc6] sm:$0xff]
        %v410 = vld [vmem:[%s168 + $0xce] sm:$0xff]
        %v411 = vld [vmem:[%s168 + $0xd6] sm:$0xff]
        %v412 = vld [vmem:[%s168 + $0xde] sm:$0xff]
        %v413 = vld [vmem:[%s168 + $0xe6] sm:$0xff]
        %v414 = vld [vmem:[%s168 + $0xee] sm:$0xff]
        %v415 = vld [vmem:[%s168 + $0xf6] sm:$0xff]
        %v416 = vld [vmem:[%s168 + $0xfe] sm:$0xff]
        %v417 = vld [vmem:[%s168 + $0x106] sm:$0xff]
        %v418 = vld [vmem:[%s168 + $0x10e] sm:$0xff]
        %v419 = vld [vmem:[%s168 + $0x116] sm:$0xff]
        %v420 = vld [vmem:[%s168 + $0x11e] sm:$0xff]
        %v421 = vld [vmem:[%s168 + $0x126] sm:$0xff]
        %v422 = vld [vmem:[%s168 + $0x12e] sm:$0xff]
        %v423 = vld [vmem:[%s168 + $0x136] sm:$0xff]
        %v424 = vld [vmem:[%s168 + $0x13e] sm:$0xff]
        %461 = vrot.lane.b32.xlu0 %v205, 4
        %v462 = vpop.permute.xlu0 %461
        %463 = vrot.lane.b32.xlu0 %v206, 4
        %v464 = vpop.permute.xlu0 %463
        %465 = vrot.lane.b32.xlu0 %v207, 4
        %v466 = vpop.permute.xlu0 %465
        %467 = vrot.lane.b32.xlu0 %v208, 4
        %v468 = vpop.permute.xlu0 %467
        %469 = vrot.lane.b32.xlu0 %v209, 4
        %v470 = vpop.permute.xlu0 %469
        %471 = vrot.lane.b32.xlu0 %v210, 4
        %v472 = vpop.permute.xlu0 %471
        %473 = vrot.lane.b32.xlu0 %v211, 4
        %v474 = vpop.permute.xlu0 %473
        %475 = vrot.lane.b32.xlu0 %v212, 4
        %v476 = vpop.permute.xlu0 %475
        %477 = vrot.lane.b32.xlu0 %v213, 4
        %v478 = vpop.permute.xlu0 %477
        %479 = vrot.lane.b32.xlu0 %v214, 4
        %v480 = vpop.permute.xlu0 %479
        %481 = vrot.lane.b32.xlu0 %v215, 4
        %v482 = vpop.permute.xlu0 %481
        %483 = vrot.lane.b32.xlu0 %v216, 4
        %v484 = vpop.permute.xlu0 %483
        %485 = vrot.lane.b32.xlu0 %v217, 4
        %v486 = vpop.permute.xlu0 %485
        %487 = vrot.lane.b32.xlu0 %v218, 4
        %v488 = vpop.permute.xlu0 %487
        %489 = vrot.lane.b32.xlu0 %v219, 4
        %v490 = vpop.permute.xlu0 %489
        %491 = vrot.lane.b32.xlu0 %v220, 4
        %v492 = vpop.permute.xlu0 %491
        %493 = vrot.lane.b32.xlu0 %v221, 4
        %v494 = vpop.permute.xlu0 %493
        %495 = vrot.lane.b32.xlu0 %v222, 4
        %v496 = vpop.permute.xlu0 %495
        %497 = vrot.lane.b32.xlu0 %v223, 4
        %v498 = vpop.permute.xlu0 %497
        %499 = vrot.lane.b32.xlu0 %v224, 4
        %v500 = vpop.permute.xlu0 %499
        %501 = vrot.lane.b32.xlu0 %v225, 4
        %v502 = vpop.permute.xlu0 %501
        %503 = vrot.lane.b32.xlu0 %v226, 4
        %v504 = vpop.permute.xlu0 %503
        %505 = vrot.lane.b32.xlu0 %v227, 4
        %v506 = vpop.permute.xlu0 %505
        %507 = vrot.lane.b32.xlu0 %v228, 4
        %v508 = vpop.permute.xlu0 %507
        %509 = vrot.lane.b32.xlu0 %v229, 4
        %v510 = vpop.permute.xlu0 %509
        %511 = vrot.lane.b32.xlu0 %v230, 4
        %v512 = vpop.permute.xlu0 %511
        %513 = vrot.lane.b32.xlu0 %v231, 4
        %v514 = vpop.permute.xlu0 %513
        %515 = vrot.lane.b32.xlu0 %v232, 4
        %v516 = vpop.permute.xlu0 %515
        %517 = vrot.lane.b32.xlu0 %v233, 4
        %v518 = vpop.permute.xlu0 %517
        %519 = vrot.lane.b32.xlu0 %v234, 4
        %v520 = vpop.permute.xlu0 %519
        %521 = vrot.lane.b32.xlu0 %v235, 4
        %v522 = vpop.permute.xlu0 %521
        %523 = vrot.lane.b32.xlu0 %v236, 4
        %v524 = vpop.permute.xlu0 %523
        %525 = vrot.lane.b32.xlu0 %v237, 4
        %v526 = vpop.permute.xlu0 %525
        %527 = vrot.lane.b32.xlu0 %v238, 4
        %v528 = vpop.permute.xlu0 %527
        %529 = vrot.lane.b32.xlu0 %v239, 4
        %v530 = vpop.permute.xlu0 %529
        %531 = vrot.lane.b32.xlu0 %v240, 4
        %v532 = vpop.permute.xlu0 %531
        %605 = vrot.lane.b32.xlu0 %v241, 8
        %v606 = vpop.permute.xlu0 %605
        %607 = vrot.lane.b32.xlu0 %v242, 8
        %v608 = vpop.permute.xlu0 %607
        %609 = vrot.lane.b32.xlu0 %v243, 8
        %v610 = vpop.permute.xlu0 %609
        %611 = vrot.lane.b32.xlu0 %v244, 8
        %v612 = vpop.permute.xlu0 %611
        %613 = vrot.lane.b32.xlu0 %v245, 8
        %v614 = vpop.permute.xlu0 %613
        %615 = vrot.lane.b32.xlu0 %v246, 8
        %v616 = vpop.permute.xlu0 %615
        %617 = vrot.lane.b32.xlu0 %v247, 8
        %v618 = vpop.permute.xlu0 %617
        %619 = vrot.lane.b32.xlu0 %v248, 8
        %v620 = vpop.permute.xlu0 %619
        %621 = vrot.lane.b32.xlu0 %v249, 8
        %v622 = vpop.permute.xlu0 %621
        %623 = vrot.lane.b32.xlu0 %v250, 8
        %v624 = vpop.permute.xlu0 %623
        %625 = vrot.lane.b32.xlu0 %v251, 8
        %v626 = vpop.permute.xlu0 %625
        %627 = vrot.lane.b32.xlu0 %v252, 8
        %v628 = vpop.permute.xlu0 %627
        %629 = vrot.lane.b32.xlu0 %v253, 8
        %v630 = vpop.permute.xlu0 %629
        %631 = vrot.lane.b32.xlu0 %v254, 8
        %v632 = vpop.permute.xlu0 %631
        %633 = vrot.lane.b32.xlu0 %v255, 8
        %v634 = vpop.permute.xlu0 %633
        %635 = vrot.lane.b32.xlu0 %v256, 8
        %v636 = vpop.permute.xlu0 %635
        %637 = vrot.lane.b32.xlu0 %v257, 8
        %v638 = vpop.permute.xlu0 %637
        %639 = vrot.lane.b32.xlu0 %v258, 8
        %v640 = vpop.permute.xlu0 %639
        %641 = vrot.lane.b32.xlu0 %v259, 8
        %v642 = vpop.permute.xlu0 %641
        %643 = vrot.lane.b32.xlu0 %v260, 8
        %v644 = vpop.permute.xlu0 %643
        %645 = vrot.lane.b32.xlu0 %v261, 8
        %v646 = vpop.permute.xlu0 %645
        %647 = vrot.lane.b32.xlu0 %v262, 8
        %v648 = vpop.permute.xlu0 %647
        %649 = vrot.lane.b32.xlu0 %v263, 8
        %v650 = vpop.permute.xlu0 %649
        %651 = vrot.lane.b32.xlu0 %v264, 8
        %v652 = vpop.permute.xlu0 %651
        %653 = vrot.lane.b32.xlu0 %v265, 8
        %v654 = vpop.permute.xlu0 %653
        %655 = vrot.lane.b32.xlu0 %v266, 8
        %v656 = vpop.permute.xlu0 %655
        %657 = vrot.lane.b32.xlu0 %v267, 8
        %v658 = vpop.permute.xlu0 %657
        %659 = vrot.lane.b32.xlu0 %v268, 8
        %v660 = vpop.permute.xlu0 %659
        %661 = vrot.lane.b32.xlu0 %v269, 8
        %v662 = vpop.permute.xlu0 %661
        %663 = vrot.lane.b32.xlu0 %v270, 8
        %v664 = vpop.permute.xlu0 %663
        %665 = vrot.lane.b32.xlu0 %v271, 8
        %v666 = vpop.permute.xlu0 %665
        %667 = vrot.lane.b32.xlu0 %v272, 8
        %v668 = vpop.permute.xlu0 %667
        %669 = vrot.lane.b32.xlu0 %v273, 8
        %v670 = vpop.permute.xlu0 %669
        %671 = vrot.lane.b32.xlu0 %v274, 8
        %v672 = vpop.permute.xlu0 %671
        %673 = vrot.lane.b32.xlu0 %v275, 8
        %v674 = vpop.permute.xlu0 %673
        %675 = vrot.lane.b32.xlu0 %v276, 8
        %v676 = vpop.permute.xlu0 %675
        %715 = vrot.lane.b32.xlu0 %v243, 12
        %v716 = vpop.permute.xlu0 %715
        %717 = vrot.lane.b32.xlu0 %v244, 12
        %v718 = vpop.permute.xlu0 %717
        %719 = vrot.lane.b32.xlu0 %v245, 12
        %v720 = vpop.permute.xlu0 %719
        %721 = vrot.lane.b32.xlu0 %v246, 12
        %v722 = vpop.permute.xlu0 %721
        %723 = vrot.lane.b32.xlu0 %v247, 12
        %v724 = vpop.permute.xlu0 %723
        %725 = vrot.lane.b32.xlu0 %v248, 12
        %v726 = vpop.permute.xlu0 %725
        %727 = vrot.lane.b32.xlu0 %v249, 12
        %v728 = vpop.permute.xlu0 %727
        %729 = vrot.lane.b32.xlu0 %v250, 12
        %v730 = vpop.permute.xlu0 %729
        %731 = vrot.lane.b32.xlu0 %v251, 12
        %v732 = vpop.permute.xlu0 %731
        %733 = vrot.lane.b32.xlu0 %v252, 12
        %v734 = vpop.permute.xlu0 %733
        %735 = vrot.lane.b32.xlu0 %v253, 12
        %v736 = vpop.permute.xlu0 %735
        %737 = vrot.lane.b32.xlu0 %v254, 12
        %v738 = vpop.permute.xlu0 %737
        %739 = vrot.lane.b32.xlu0 %v255, 12
        %v740 = vpop.permute.xlu0 %739
        %741 = vrot.lane.b32.xlu0 %v256, 12
        %v742 = vpop.permute.xlu0 %741
        %743 = vrot.lane.b32.xlu0 %v257, 12
        %v744 = vpop.permute.xlu0 %743
        %745 = vrot.lane.b32.xlu0 %v258, 12
        %v746 = vpop.permute.xlu0 %745
        %747 = vrot.lane.b32.xlu0 %v259, 12
        %v748 = vpop.permute.xlu0 %747
        %749 = vrot.lane.b32.xlu0 %v260, 12
        %v750 = vpop.permute.xlu0 %749
        %751 = vrot.lane.b32.xlu0 %v261, 12
        %v752 = vpop.permute.xlu0 %751
        %753 = vrot.lane.b32.xlu0 %v262, 12
        %v754 = vpop.permute.xlu0 %753
        %755 = vrot.lane.b32.xlu0 %v263, 12
        %v756 = vpop.permute.xlu0 %755
        %757 = vrot.lane.b32.xlu0 %v264, 12
        %v758 = vpop.permute.xlu0 %757
        %759 = vrot.lane.b32.xlu0 %v265, 12
        %v760 = vpop.permute.xlu0 %759
        %761 = vrot.lane.b32.xlu0 %v266, 12
        %v762 = vpop.permute.xlu0 %761
        %763 = vrot.lane.b32.xlu0 %v267, 12
        %v764 = vpop.permute.xlu0 %763
        %765 = vrot.lane.b32.xlu0 %v268, 12
        %v766 = vpop.permute.xlu0 %765
        %767 = vrot.lane.b32.xlu0 %v269, 12
        %v768 = vpop.permute.xlu0 %767
        %769 = vrot.lane.b32.xlu0 %v270, 12
        %v770 = vpop.permute.xlu0 %769
        %771 = vrot.lane.b32.xlu0 %v271, 12
        %v772 = vpop.permute.xlu0 %771
        %773 = vrot.lane.b32.xlu0 %v272, 12
        %v774 = vpop.permute.xlu0 %773
        %775 = vrot.lane.b32.xlu0 %v273, 12
        %v776 = vpop.permute.xlu0 %775
        %777 = vrot.lane.b32.xlu0 %v274, 12
        %v778 = vpop.permute.xlu0 %777
        %779 = vrot.lane.b32.xlu0 %v275, 12
        %v780 = vpop.permute.xlu0 %779
        %781 = vrot.lane.b32.xlu0 %v276, 12
        %v782 = vpop.permute.xlu0 %781
        %783 = vrot.lane.b32.xlu0 %v277, 12
        %v784 = vpop.permute.xlu0 %783
        %785 = vrot.lane.b32.xlu0 %v278, 12
        %v786 = vpop.permute.xlu0 %785
        %859 = vrot.lane.b32.xlu0 %v279, 16
        %v860 = vpop.permute.xlu0 %859
        %861 = vrot.lane.b32.xlu0 %v280, 16
        %v862 = vpop.permute.xlu0 %861
        %863 = vrot.lane.b32.xlu0 %v281, 16
        %v864 = vpop.permute.xlu0 %863
        %865 = vrot.lane.b32.xlu0 %v282, 16
        %v866 = vpop.permute.xlu0 %865
        %867 = vrot.lane.b32.xlu0 %v283, 16
        %v868 = vpop.permute.xlu0 %867
        %869 = vrot.lane.b32.xlu0 %v284, 16
        %v870 = vpop.permute.xlu0 %869
        %871 = vrot.lane.b32.xlu0 %v285, 16
        %v872 = vpop.permute.xlu0 %871
        %873 = vrot.lane.b32.xlu0 %v286, 16
        %v874 = vpop.permute.xlu0 %873
        %875 = vrot.lane.b32.xlu0 %v287, 16
        %v876 = vpop.permute.xlu0 %875
        %877 = vrot.lane.b32.xlu0 %v288, 16
        %v878 = vpop.permute.xlu0 %877
        %879 = vrot.lane.b32.xlu0 %v289, 16
        %v880 = vpop.permute.xlu0 %879
        %881 = vrot.lane.b32.xlu0 %v290, 16
        %v882 = vpop.permute.xlu0 %881
        %883 = vrot.lane.b32.xlu0 %v291, 16
        %v884 = vpop.permute.xlu0 %883
        %885 = vrot.lane.b32.xlu0 %v292, 16
        %v886 = vpop.permute.xlu0 %885
        %887 = vrot.lane.b32.xlu0 %v293, 16
        %v888 = vpop.permute.xlu0 %887
        %889 = vrot.lane.b32.xlu0 %v294, 16
        %v890 = vpop.permute.xlu0 %889
        %891 = vrot.lane.b32.xlu0 %v295, 16
        %v892 = vpop.permute.xlu0 %891
        %893 = vrot.lane.b32.xlu0 %v296, 16
        %v894 = vpop.permute.xlu0 %893
        %895 = vrot.lane.b32.xlu0 %v297, 16
        %v896 = vpop.permute.xlu0 %895
        %897 = vrot.lane.b32.xlu0 %v298, 16
        %v898 = vpop.permute.xlu0 %897
        %899 = vrot.lane.b32.xlu0 %v299, 16
        %v900 = vpop.permute.xlu0 %899
        %901 = vrot.lane.b32.xlu0 %v300, 16
        %v902 = vpop.permute.xlu0 %901
        %903 = vrot.lane.b32.xlu0 %v301, 16
        %v904 = vpop.permute.xlu0 %903
        %905 = vrot.lane.b32.xlu0 %v302, 16
        %v906 = vpop.permute.xlu0 %905
        %907 = vrot.lane.b32.xlu0 %v303, 16
        %v908 = vpop.permute.xlu0 %907
        %909 = vrot.lane.b32.xlu0 %v304, 16
        %v910 = vpop.permute.xlu0 %909
        %911 = vrot.lane.b32.xlu0 %v305, 16
        %v912 = vpop.permute.xlu0 %911
        %913 = vrot.lane.b32.xlu0 %v306, 16
        %v914 = vpop.permute.xlu0 %913
        %915 = vrot.lane.b32.xlu0 %v307, 16
        %v916 = vpop.permute.xlu0 %915
        %917 = vrot.lane.b32.xlu0 %v308, 16
        %v918 = vpop.permute.xlu0 %917
        %919 = vrot.lane.b32.xlu0 %v309, 16
        %v920 = vpop.permute.xlu0 %919
        %921 = vrot.lane.b32.xlu0 %v310, 16
        %v922 = vpop.permute.xlu0 %921
        %923 = vrot.lane.b32.xlu0 %v311, 16
        %v924 = vpop.permute.xlu0 %923
        %925 = vrot.lane.b32.xlu0 %v312, 16
        %v926 = vpop.permute.xlu0 %925
        %927 = vrot.lane.b32.xlu0 %v313, 16
        %v928 = vpop.permute.xlu0 %927
        %929 = vrot.lane.b32.xlu0 %v314, 16
        %v930 = vpop.permute.xlu0 %929
        %1003 = vrot.lane.b32.xlu0 %v315, 20
        %v1004 = vpop.permute.xlu0 %1003
        %1005 = vrot.lane.b32.xlu0 %v316, 20
        %v1006 = vpop.permute.xlu0 %1005
        %1007 = vrot.lane.b32.xlu0 %v317, 20
        %v1008 = vpop.permute.xlu0 %1007
        %1009 = vrot.lane.b32.xlu0 %v318, 20
        %v1010 = vpop.permute.xlu0 %1009
        %1011 = vrot.lane.b32.xlu0 %v319, 20
        %v1012 = vpop.permute.xlu0 %1011
        %1013 = vrot.lane.b32.xlu0 %v320, 20
        %v1014 = vpop.permute.xlu0 %1013
        %1015 = vrot.lane.b32.xlu0 %v321, 20
        %v1016 = vpop.permute.xlu0 %1015
        %1017 = vrot.lane.b32.xlu0 %v322, 20
        %v1018 = vpop.permute.xlu0 %1017
        %1019 = vrot.lane.b32.xlu0 %v323, 20
        %v1020 = vpop.permute.xlu0 %1019
        %1021 = vrot.lane.b32.xlu0 %v324, 20
        %v1022 = vpop.permute.xlu0 %1021
        %1023 = vrot.lane.b32.xlu0 %v325, 20
        %v1024 = vpop.permute.xlu0 %1023
        %1025 = vrot.lane.b32.xlu0 %v326, 20
        %v1026 = vpop.permute.xlu0 %1025
        %1027 = vrot.lane.b32.xlu0 %v327, 20
        %v1028 = vpop.permute.xlu0 %1027
        %1029 = vrot.lane.b32.xlu0 %v328, 20
        %v1030 = vpop.permute.xlu0 %1029
        %1031 = vrot.lane.b32.xlu0 %v329, 20
        %v1032 = vpop.permute.xlu0 %1031
        %1033 = vrot.lane.b32.xlu0 %v330, 20
        %v1034 = vpop.permute.xlu0 %1033
        %1035 = vrot.lane.b32.xlu0 %v331, 20
        %v1036 = vpop.permute.xlu0 %1035
        %1037 = vrot.lane.b32.xlu0 %v332, 20
        %v1038 = vpop.permute.xlu0 %1037
        %1039 = vrot.lane.b32.xlu0 %v333, 20
        %v1040 = vpop.permute.xlu0 %1039
        %1041 = vrot.lane.b32.xlu0 %v334, 20
        %v1042 = vpop.permute.xlu0 %1041
        %1043 = vrot.lane.b32.xlu0 %v335, 20
        %v1044 = vpop.permute.xlu0 %1043
        %1045 = vrot.lane.b32.xlu0 %v336, 20
        %v1046 = vpop.permute.xlu0 %1045
        %1047 = vrot.lane.b32.xlu0 %v337, 20
        %v1048 = vpop.permute.xlu0 %1047
        %1049 = vrot.lane.b32.xlu0 %v338, 20
        %v1050 = vpop.permute.xlu0 %1049
        %1051 = vrot.lane.b32.xlu0 %v339, 20
        %v1052 = vpop.permute.xlu0 %1051
        %1053 = vrot.lane.b32.xlu0 %v340, 20
        %v1054 = vpop.permute.xlu0 %1053
        %1055 = vrot.lane.b32.xlu0 %v341, 20
        %v1056 = vpop.permute.xlu0 %1055
        %1057 = vrot.lane.b32.xlu0 %v342, 20
        %v1058 = vpop.permute.xlu0 %1057
        %1059 = vrot.lane.b32.xlu0 %v343, 20
        %v1060 = vpop.permute.xlu0 %1059
        %1061 = vrot.lane.b32.xlu0 %v344, 20
        %v1062 = vpop.permute.xlu0 %1061
        %1063 = vrot.lane.b32.xlu0 %v345, 20
        %v1064 = vpop.permute.xlu0 %1063
        %1065 = vrot.lane.b32.xlu0 %v346, 20
        %v1066 = vpop.permute.xlu0 %1065
        %1067 = vrot.lane.b32.xlu0 %v347, 20
        %v1068 = vpop.permute.xlu0 %1067
        %1069 = vrot.lane.b32.xlu0 %v348, 20
        %v1070 = vpop.permute.xlu0 %1069
        %1071 = vrot.lane.b32.xlu0 %v349, 20
        %v1072 = vpop.permute.xlu0 %1071
        %1073 = vrot.lane.b32.xlu0 %v350, 20
        %v1074 = vpop.permute.xlu0 %1073
        %1113 = vrot.lane.b32.xlu0 %v317, 24
        %v1114 = vpop.permute.xlu0 %1113
        %1115 = vrot.lane.b32.xlu0 %v318, 24
        %v1116 = vpop.permute.xlu0 %1115
        %1117 = vrot.lane.b32.xlu0 %v319, 24
        %v1118 = vpop.permute.xlu0 %1117
        %1119 = vrot.lane.b32.xlu0 %v320, 24
        %v1120 = vpop.permute.xlu0 %1119
        %1121 = vrot.lane.b32.xlu0 %v321, 24
        %v1122 = vpop.permute.xlu0 %1121
        %1123 = vrot.lane.b32.xlu0 %v322, 24
        %v1124 = vpop.permute.xlu0 %1123
        %1125 = vrot.lane.b32.xlu0 %v323, 24
        %v1126 = vpop.permute.xlu0 %1125
        %1127 = vrot.lane.b32.xlu0 %v324, 24
        %v1128 = vpop.permute.xlu0 %1127
        %1129 = vrot.lane.b32.xlu0 %v325, 24
        %v1130 = vpop.permute.xlu0 %1129
        %1131 = vrot.lane.b32.xlu0 %v326, 24
        %v1132 = vpop.permute.xlu0 %1131
        %1133 = vrot.lane.b32.xlu0 %v327, 24
        %v1134 = vpop.permute.xlu0 %1133
        %1135 = vrot.lane.b32.xlu0 %v328, 24
        %v1136 = vpop.permute.xlu0 %1135
        %1137 = vrot.lane.b32.xlu0 %v329, 24
        %v1138 = vpop.permute.xlu0 %1137
        %1139 = vrot.lane.b32.xlu0 %v330, 24
        %v1140 = vpop.permute.xlu0 %1139
        %1141 = vrot.lane.b32.xlu0 %v331, 24
        %v1142 = vpop.permute.xlu0 %1141
        %1143 = vrot.lane.b32.xlu0 %v332, 24
        %v1144 = vpop.permute.xlu0 %1143
        %1145 = vrot.lane.b32.xlu0 %v333, 24
        %v1146 = vpop.permute.xlu0 %1145
        %1147 = vrot.lane.b32.xlu0 %v334, 24
        %v1148 = vpop.permute.xlu0 %1147
        %1149 = vrot.lane.b32.xlu0 %v335, 24
        %v1150 = vpop.permute.xlu0 %1149
        %1151 = vrot.lane.b32.xlu0 %v336, 24
        %v1152 = vpop.permute.xlu0 %1151
        %1153 = vrot.lane.b32.xlu0 %v337, 24
        %v1154 = vpop.permute.xlu0 %1153
        %1155 = vrot.lane.b32.xlu0 %v338, 24
        %v1156 = vpop.permute.xlu0 %1155
        %1157 = vrot.lane.b32.xlu0 %v339, 24
        %v1158 = vpop.permute.xlu0 %1157
        %1159 = vrot.lane.b32.xlu0 %v340, 24
        %v1160 = vpop.permute.xlu0 %1159
        %1161 = vrot.lane.b32.xlu0 %v341, 24
        %v1162 = vpop.permute.xlu0 %1161
        %1163 = vrot.lane.b32.xlu0 %v342, 24
        %v1164 = vpop.permute.xlu0 %1163
        %1165 = vrot.lane.b32.xlu0 %v343, 24
        %v1166 = vpop.permute.xlu0 %1165
        %1167 = vrot.lane.b32.xlu0 %v344, 24
        %v1168 = vpop.permute.xlu0 %1167
        %1169 = vrot.lane.b32.xlu0 %v345, 24
        %v1170 = vpop.permute.xlu0 %1169
        %1171 = vrot.lane.b32.xlu0 %v346, 24
        %v1172 = vpop.permute.xlu0 %1171
        %1173 = vrot.lane.b32.xlu0 %v347, 24
        %v1174 = vpop.permute.xlu0 %1173
        %1175 = vrot.lane.b32.xlu0 %v348, 24
        %v1176 = vpop.permute.xlu0 %1175
        %1177 = vrot.lane.b32.xlu0 %v349, 24
        %v1178 = vpop.permute.xlu0 %1177
        %1179 = vrot.lane.b32.xlu0 %v350, 24
        %v1180 = vpop.permute.xlu0 %1179
        %1181 = vrot.lane.b32.xlu0 %v351, 24
        %v1182 = vpop.permute.xlu0 %1181
        %1183 = vrot.lane.b32.xlu0 %v352, 24
        %v1184 = vpop.permute.xlu0 %1183
        %1257 = vrot.lane.b32.xlu0 %v353, 28
        %v1258 = vpop.permute.xlu0 %1257
        %1259 = vrot.lane.b32.xlu0 %v354, 28
        %v1260 = vpop.permute.xlu0 %1259
        %1261 = vrot.lane.b32.xlu0 %v355, 28
        %v1262 = vpop.permute.xlu0 %1261
        %1263 = vrot.lane.b32.xlu0 %v356, 28
        %v1264 = vpop.permute.xlu0 %1263
        %1265 = vrot.lane.b32.xlu0 %v357, 28
        %v1266 = vpop.permute.xlu0 %1265
        %1267 = vrot.lane.b32.xlu0 %v358, 28
        %v1268 = vpop.permute.xlu0 %1267
        %1269 = vrot.lane.b32.xlu0 %v359, 28
        %v1270 = vpop.permute.xlu0 %1269
        %1271 = vrot.lane.b32.xlu0 %v360, 28
        %v1272 = vpop.permute.xlu0 %1271
        %1273 = vrot.lane.b32.xlu0 %v361, 28
        %v1274 = vpop.permute.xlu0 %1273
        %1275 = vrot.lane.b32.xlu0 %v362, 28
        %v1276 = vpop.permute.xlu0 %1275
        %1277 = vrot.lane.b32.xlu0 %v363, 28
        %v1278 = vpop.permute.xlu0 %1277
        %1279 = vrot.lane.b32.xlu0 %v364, 28
        %v1280 = vpop.permute.xlu0 %1279
        %1281 = vrot.lane.b32.xlu0 %v365, 28
        %v1282 = vpop.permute.xlu0 %1281
        %1283 = vrot.lane.b32.xlu0 %v366, 28
        %v1284 = vpop.permute.xlu0 %1283
        %1285 = vrot.lane.b32.xlu0 %v367, 28
        %v1286 = vpop.permute.xlu0 %1285
        %1287 = vrot.lane.b32.xlu0 %v368, 28
        %v1288 = vpop.permute.xlu0 %1287
        %1289 = vrot.lane.b32.xlu0 %v369, 28
        %v1290 = vpop.permute.xlu0 %1289
        %1291 = vrot.lane.b32.xlu0 %v370, 28
        %v1292 = vpop.permute.xlu0 %1291
        %1293 = vrot.lane.b32.xlu0 %v371, 28
        %v1294 = vpop.permute.xlu0 %1293
        %1295 = vrot.lane.b32.xlu0 %v372, 28
        %v1296 = vpop.permute.xlu0 %1295
        %1297 = vrot.lane.b32.xlu0 %v373, 28
        %v1298 = vpop.permute.xlu0 %1297
        %1299 = vrot.lane.b32.xlu0 %v374, 28
        %v1300 = vpop.permute.xlu0 %1299
        %1301 = vrot.lane.b32.xlu0 %v375, 28
        %v1302 = vpop.permute.xlu0 %1301
        %1303 = vrot.lane.b32.xlu0 %v376, 28
        %v1304 = vpop.permute.xlu0 %1303
        %1305 = vrot.lane.b32.xlu0 %v377, 28
        %v1306 = vpop.permute.xlu0 %1305
        %1307 = vrot.lane.b32.xlu0 %v378, 28
        %v1308 = vpop.permute.xlu0 %1307
        %1309 = vrot.lane.b32.xlu0 %v379, 28
        %v1310 = vpop.permute.xlu0 %1309
        %1311 = vrot.lane.b32.xlu0 %v380, 28
        %v1312 = vpop.permute.xlu0 %1311
        %1313 = vrot.lane.b32.xlu0 %v381, 28
        %v1314 = vpop.permute.xlu0 %1313
        %1315 = vrot.lane.b32.xlu0 %v382, 28
        %v1316 = vpop.permute.xlu0 %1315
        %1317 = vrot.lane.b32.xlu0 %v383, 28
        %v1318 = vpop.permute.xlu0 %1317
        %1319 = vrot.lane.b32.xlu0 %v384, 28
        %v1320 = vpop.permute.xlu0 %1319
        %1321 = vrot.lane.b32.xlu0 %v385, 28
        %v1322 = vpop.permute.xlu0 %1321
        %1323 = vrot.lane.b32.xlu0 %v386, 28
        %v1324 = vpop.permute.xlu0 %1323
        %1325 = vrot.lane.b32.xlu0 %v387, 28
        %v1326 = vpop.permute.xlu0 %1325
        %1327 = vrot.lane.b32.xlu0 %v388, 28
        %v1328 = vpop.permute.xlu0 %1327
        %1401 = vrot.lane.b32.xlu0 %v389, 32
        %v1402 = vpop.permute.xlu0 %1401
        %1403 = vrot.lane.b32.xlu0 %v390, 32
        %v1404 = vpop.permute.xlu0 %1403
        %1405 = vrot.lane.b32.xlu0 %v391, 32
        %v1406 = vpop.permute.xlu0 %1405
        %1407 = vrot.lane.b32.xlu0 %v392, 32
        %v1408 = vpop.permute.xlu0 %1407
        %1409 = vrot.lane.b32.xlu0 %v393, 32
        %v1410 = vpop.permute.xlu0 %1409
        %1411 = vrot.lane.b32.xlu0 %v394, 32
        %v1412 = vpop.permute.xlu0 %1411
        %1413 = vrot.lane.b32.xlu0 %v395, 32
        %v1414 = vpop.permute.xlu0 %1413
        %1415 = vrot.lane.b32.xlu0 %v396, 32
        %v1416 = vpop.permute.xlu0 %1415
        %1417 = vrot.lane.b32.xlu0 %v397, 32
        %v1418 = vpop.permute.xlu0 %1417
        %1419 = vrot.lane.b32.xlu0 %v398, 32
        %v1420 = vpop.permute.xlu0 %1419
        %1421 = vrot.lane.b32.xlu0 %v399, 32
        %v1422 = vpop.permute.xlu0 %1421
        %1423 = vrot.lane.b32.xlu0 %v400, 32
        %v1424 = vpop.permute.xlu0 %1423
        %1425 = vrot.lane.b32.xlu0 %v401, 32
        %v1426 = vpop.permute.xlu0 %1425
        %1427 = vrot.lane.b32.xlu0 %v402, 32
        %v1428 = vpop.permute.xlu0 %1427
        %1429 = vrot.lane.b32.xlu0 %v403, 32
        %v1430 = vpop.permute.xlu0 %1429
        %1431 = vrot.lane.b32.xlu0 %v404, 32
        %v1432 = vpop.permute.xlu0 %1431
        %1433 = vrot.lane.b32.xlu0 %v405, 32
        %v1434 = vpop.permute.xlu0 %1433
        %1435 = vrot.lane.b32.xlu0 %v406, 32
        %v1436 = vpop.permute.xlu0 %1435
        %1437 = vrot.lane.b32.xlu0 %v407, 32
        %v1438 = vpop.permute.xlu0 %1437
        %1439 = vrot.lane.b32.xlu0 %v408, 32
        %v1440 = vpop.permute.xlu0 %1439
        %1441 = vrot.lane.b32.xlu0 %v409, 32
        %v1442 = vpop.permute.xlu0 %1441
        %1443 = vrot.lane.b32.xlu0 %v410, 32
        %v1444 = vpop.permute.xlu0 %1443
        %1445 = vrot.lane.b32.xlu0 %v411, 32
        %v1446 = vpop.permute.xlu0 %1445
        %1447 = vrot.lane.b32.xlu0 %v412, 32
        %v1448 = vpop.permute.xlu0 %1447
        %1449 = vrot.lane.b32.xlu0 %v413, 32
        %v1450 = vpop.permute.xlu0 %1449
        %1451 = vrot.lane.b32.xlu0 %v414, 32
        %v1452 = vpop.permute.xlu0 %1451
        %1453 = vrot.lane.b32.xlu0 %v415, 32
        %v1454 = vpop.permute.xlu0 %1453
        %1455 = vrot.lane.b32.xlu0 %v416, 32
        %v1456 = vpop.permute.xlu0 %1455
        %1457 = vrot.lane.b32.xlu0 %v417, 32
        %v1458 = vpop.permute.xlu0 %1457
        %1459 = vrot.lane.b32.xlu0 %v418, 32
        %v1460 = vpop.permute.xlu0 %1459
        %1461 = vrot.lane.b32.xlu0 %v419, 32
        %v1462 = vpop.permute.xlu0 %1461
        %1463 = vrot.lane.b32.xlu0 %v420, 32
        %v1464 = vpop.permute.xlu0 %1463
        %1465 = vrot.lane.b32.xlu0 %v421, 32
        %v1466 = vpop.permute.xlu0 %1465
        %1467 = vrot.lane.b32.xlu0 %v422, 32
        %v1468 = vpop.permute.xlu0 %1467
        %1469 = vrot.lane.b32.xlu0 %v423, 32
        %v1470 = vpop.permute.xlu0 %1469
        %1471 = vrot.lane.b32.xlu0 %v424, 32
        %v1472 = vpop.permute.xlu0 %1471
        %vm1509 = vcmask 31744
        %v1510 = vsel %vm1509, %v169, %v462
        %v1511 = vsel %vm1509, %v170, %v464
        %v1512 = vsel %vm1509, %v171, %v466
        %v1513 = vsel %vm1509, %v172, %v468
        %v1514 = vsel %vm1509, %v173, %v470
        %v1515 = vsel %vm1509, %v174, %v472
        %v1516 = vsel %vm1509, %v175, %v474
        %v1517 = vsel %vm1509, %v176, %v476
        %v1518 = vsel %vm1509, %v177, %v478
        %v1519 = vsel %vm1509, %v178, %v480
        %v1520 = vsel %vm1509, %v179, %v482
        %v1521 = vsel %vm1509, %v180, %v484
        %v1522 = vsel %vm1509, %v181, %v486
        %v1523 = vsel %vm1509, %v182, %v488
        %v1524 = vsel %vm1509, %v183, %v490
        %v1525 = vsel %vm1509, %v184, %v492
        %v1526 = vsel %vm1509, %v185, %v494
        %v1527 = vsel %vm1509, %v186, %v496
        %v1528 = vsel %vm1509, %v187, %v498
        %v1529 = vsel %vm1509, %v188, %v500
        %v1530 = vsel %vm1509, %v189, %v502
        %v1531 = vsel %vm1509, %v190, %v504
        %v1532 = vsel %vm1509, %v191, %v506
        %v1533 = vsel %vm1509, %v192, %v508
        %v1534 = vsel %vm1509, %v193, %v510
        %v1535 = vsel %vm1509, %v194, %v512
        %v1536 = vsel %vm1509, %v195, %v514
        %v1537 = vsel %vm1509, %v196, %v516
        %v1538 = vsel %vm1509, %v197, %v518
        %v1539 = vsel %vm1509, %v198, %v520
        %v1540 = vsel %vm1509, %v199, %v522
        %v1541 = vsel %vm1509, %v200, %v524
        %v1542 = vsel %vm1509, %v201, %v526
        %v1543 = vsel %vm1509, %v202, %v528
        %v1544 = vsel %vm1509, %v203, %v530
        %v1545 = vsel %vm1509, %v204, %v532
        %vm1546 = vcmask 64512
        %v1547 = vsel %vm1546, %v1510, %v606
        %v1548 = vsel %vm1546, %v1511, %v608
        %v1549 = vsel %vm1546, %v1512, %v610
        %v1550 = vsel %vm1546, %v1513, %v612
        %v1551 = vsel %vm1546, %v1514, %v614
        %v1552 = vsel %vm1546, %v1515, %v616
        %v1553 = vsel %vm1546, %v1516, %v618
        %v1554 = vsel %vm1546, %v1517, %v620
        %v1555 = vsel %vm1546, %v1518, %v622
        %v1556 = vsel %vm1546, %v1519, %v624
        %v1557 = vsel %vm1546, %v1520, %v626
        %v1558 = vsel %vm1546, %v1521, %v628
        %v1559 = vsel %vm1546, %v1522, %v630
        %v1560 = vsel %vm1546, %v1523, %v632
        %v1561 = vsel %vm1546, %v1524, %v634
        %v1562 = vsel %vm1546, %v1525, %v636
        %v1563 = vsel %vm1546, %v1526, %v638
        %v1564 = vsel %vm1546, %v1527, %v640
        %v1565 = vsel %vm1546, %v1528, %v642
        %v1566 = vsel %vm1546, %v1529, %v644
        %v1567 = vsel %vm1546, %v1530, %v646
        %v1568 = vsel %vm1546, %v1531, %v648
        %v1569 = vsel %vm1546, %v1532, %v650
        %v1570 = vsel %vm1546, %v1533, %v652
        %v1571 = vsel %vm1546, %v1534, %v654
        %v1572 = vsel %vm1546, %v1535, %v656
        %v1573 = vsel %vm1546, %v1536, %v658
        %v1574 = vsel %vm1546, %v1537, %v660
        %v1575 = vsel %vm1546, %v1538, %v662
        %v1576 = vsel %vm1546, %v1539, %v664
        %v1577 = vsel %vm1546, %v1540, %v666
        %v1578 = vsel %vm1546, %v1541, %v668
        %v1579 = vsel %vm1546, %v1542, %v670
        %v1580 = vsel %vm1546, %v1543, %v672
        %v1581 = vsel %vm1546, %v1544, %v674
        %v1582 = vsel %vm1546, %v1545, %v676
        %vm1583 = vcmask 97280
        %v1584 = vsel %vm1583, %v1547, %v716
        %v1585 = vsel %vm1583, %v1548, %v718
        %v1586 = vsel %vm1583, %v1549, %v720
        %v1587 = vsel %vm1583, %v1550, %v722
        %v1588 = vsel %vm1583, %v1551, %v724
        %v1589 = vsel %vm1583, %v1552, %v726
        %v1590 = vsel %vm1583, %v1553, %v728
        %v1591 = vsel %vm1583, %v1554, %v730
        %v1592 = vsel %vm1583, %v1555, %v732
        %v1593 = vsel %vm1583, %v1556, %v734
        %v1594 = vsel %vm1583, %v1557, %v736
        %v1595 = vsel %vm1583, %v1558, %v738
        %v1596 = vsel %vm1583, %v1559, %v740
        %v1597 = vsel %vm1583, %v1560, %v742
        %v1598 = vsel %vm1583, %v1561, %v744
        %v1599 = vsel %vm1583, %v1562, %v746
        %v1600 = vsel %vm1583, %v1563, %v748
        %v1601 = vsel %vm1583, %v1564, %v750
        %v1602 = vsel %vm1583, %v1565, %v752
        %v1603 = vsel %vm1583, %v1566, %v754
        %v1604 = vsel %vm1583, %v1567, %v756
        %v1605 = vsel %vm1583, %v1568, %v758
        %v1606 = vsel %vm1583, %v1569, %v760
        %v1607 = vsel %vm1583, %v1570, %v762
        %v1608 = vsel %vm1583, %v1571, %v764
        %v1609 = vsel %vm1583, %v1572, %v766
        %v1610 = vsel %vm1583, %v1573, %v768
        %v1611 = vsel %vm1583, %v1574, %v770
        %v1612 = vsel %vm1583, %v1575, %v772
        %v1613 = vsel %vm1583, %v1576, %v774
        %v1614 = vsel %vm1583, %v1577, %v776
        %v1615 = vsel %vm1583, %v1578, %v778
        %v1616 = vsel %vm1583, %v1579, %v780
        %v1617 = vsel %vm1583, %v1580, %v782
        %v1618 = vsel %vm1583, %v1581, %v784
        %v1619 = vsel %vm1583, %v1582, %v786
        %vm1620 = vcmask 130048
        %v1621 = vsel %vm1620, %v1584, %v860
        %v1622 = vsel %vm1620, %v1585, %v862
        %v1623 = vsel %vm1620, %v1586, %v864
        %v1624 = vsel %vm1620, %v1587, %v866
        %v1625 = vsel %vm1620, %v1588, %v868
        %v1626 = vsel %vm1620, %v1589, %v870
        %v1627 = vsel %vm1620, %v1590, %v872
        %v1628 = vsel %vm1620, %v1591, %v874
        %v1629 = vsel %vm1620, %v1592, %v876
        %v1630 = vsel %vm1620, %v1593, %v878
        %v1631 = vsel %vm1620, %v1594, %v880
        %v1632 = vsel %vm1620, %v1595, %v882
        %v1633 = vsel %vm1620, %v1596, %v884
        %v1634 = vsel %vm1620, %v1597, %v886
        %v1635 = vsel %vm1620, %v1598, %v888
        %v1636 = vsel %vm1620, %v1599, %v890
        %v1637 = vsel %vm1620, %v1600, %v892
        %v1638 = vsel %vm1620, %v1601, %v894
        %v1639 = vsel %vm1620, %v1602, %v896
        %v1640 = vsel %vm1620, %v1603, %v898
        %v1641 = vsel %vm1620, %v1604, %v900
        %v1642 = vsel %vm1620, %v1605, %v902
        %v1643 = vsel %vm1620, %v1606, %v904
        %v1644 = vsel %vm1620, %v1607, %v906
        %v1645 = vsel %vm1620, %v1608, %v908
        %v1646 = vsel %vm1620, %v1609, %v910
        %v1647 = vsel %vm1620, %v1610, %v912
        %v1648 = vsel %vm1620, %v1611, %v914
        %v1649 = vsel %vm1620, %v1612, %v916
        %v1650 = vsel %vm1620, %v1613, %v918
        %v1651 = vsel %vm1620, %v1614, %v920
        %v1652 = vsel %vm1620, %v1615, %v922
        %v1653 = vsel %vm1620, %v1616, %v924
        %v1654 = vsel %vm1620, %v1617, %v926
        %v1655 = vsel %vm1620, %v1618, %v928
        %v1656 = vsel %vm1620, %v1619, %v930
        %vm1657 = vcmask 162816
        %v1658 = vsel %vm1657, %v1621, %v1004
        %v1659 = vsel %vm1657, %v1622, %v1006
        %v1660 = vsel %vm1657, %v1623, %v1008
        %v1661 = vsel %vm1657, %v1624, %v1010
        %v1662 = vsel %vm1657, %v1625, %v1012
        %v1663 = vsel %vm1657, %v1626, %v1014
        %v1664 = vsel %vm1657, %v1627, %v1016
        %v1665 = vsel %vm1657, %v1628, %v1018
        %v1666 = vsel %vm1657, %v1629, %v1020
        %v1667 = vsel %vm1657, %v1630, %v1022
        %v1668 = vsel %vm1657, %v1631, %v1024
        %v1669 = vsel %vm1657, %v1632, %v1026
        %v1670 = vsel %vm1657, %v1633, %v1028
        %v1671 = vsel %vm1657, %v1634, %v1030
        %v1672 = vsel %vm1657, %v1635, %v1032
        %v1673 = vsel %vm1657, %v1636, %v1034
        %v1674 = vsel %vm1657, %v1637, %v1036
        %v1675 = vsel %vm1657, %v1638, %v1038
        %v1676 = vsel %vm1657, %v1639, %v1040
        %v1677 = vsel %vm1657, %v1640, %v1042
        %v1678 = vsel %vm1657, %v1641, %v1044
        %v1679 = vsel %vm1657, %v1642, %v1046
        %v1680 = vsel %vm1657, %v1643, %v1048
        %v1681 = vsel %vm1657, %v1644, %v1050
        %v1682 = vsel %vm1657, %v1645, %v1052
        %v1683 = vsel %vm1657, %v1646, %v1054
        %v1684 = vsel %vm1657, %v1647, %v1056
        %v1685 = vsel %vm1657, %v1648, %v1058
        %v1686 = vsel %vm1657, %v1649, %v1060
        %v1687 = vsel %vm1657, %v1650, %v1062
        %v1688 = vsel %vm1657, %v1651, %v1064
        %v1689 = vsel %vm1657, %v1652, %v1066
        %v1690 = vsel %vm1657, %v1653, %v1068
        %v1691 = vsel %vm1657, %v1654, %v1070
        %v1692 = vsel %vm1657, %v1655, %v1072
        %v1693 = vsel %vm1657, %v1656, %v1074
        %vm1694 = vcmask 195584
        %v1695 = vsel %vm1694, %v1658, %v1114
        %v1696 = vsel %vm1694, %v1659, %v1116
        %v1697 = vsel %vm1694, %v1660, %v1118
        %v1698 = vsel %vm1694, %v1661, %v1120
        %v1699 = vsel %vm1694, %v1662, %v1122
        %v1700 = vsel %vm1694, %v1663, %v1124
        %v1701 = vsel %vm1694, %v1664, %v1126
        %v1702 = vsel %vm1694, %v1665, %v1128
        %v1703 = vsel %vm1694, %v1666, %v1130
        %v1704 = vsel %vm1694, %v1667, %v1132
        %v1705 = vsel %vm1694, %v1668, %v1134
        %v1706 = vsel %vm1694, %v1669, %v1136
        %v1707 = vsel %vm1694, %v1670, %v1138
        %v1708 = vsel %vm1694, %v1671, %v1140
        %v1709 = vsel %vm1694, %v1672, %v1142
        %v1710 = vsel %vm1694, %v1673, %v1144
        %v1711 = vsel %vm1694, %v1674, %v1146
        %v1712 = vsel %vm1694, %v1675, %v1148
        %v1713 = vsel %vm1694, %v1676, %v1150
        %v1714 = vsel %vm1694, %v1677, %v1152
        %v1715 = vsel %vm1694, %v1678, %v1154
        %v1716 = vsel %vm1694, %v1679, %v1156
        %v1717 = vsel %vm1694, %v1680, %v1158
        %v1718 = vsel %vm1694, %v1681, %v1160
        %v1719 = vsel %vm1694, %v1682, %v1162
        %v1720 = vsel %vm1694, %v1683, %v1164
        %v1721 = vsel %vm1694, %v1684, %v1166
        %v1722 = vsel %vm1694, %v1685, %v1168
        %v1723 = vsel %vm1694, %v1686, %v1170
        %v1724 = vsel %vm1694, %v1687, %v1172
        %v1725 = vsel %vm1694, %v1688, %v1174
        %v1726 = vsel %vm1694, %v1689, %v1176
        %v1727 = vsel %vm1694, %v1690, %v1178
        %v1728 = vsel %vm1694, %v1691, %v1180
        %v1729 = vsel %vm1694, %v1692, %v1182
        %v1730 = vsel %vm1694, %v1693, %v1184
        %vm1731 = vcmask 228352
        %v1732 = vsel %vm1731, %v1695, %v1258
        %v1733 = vsel %vm1731, %v1696, %v1260
        %v1734 = vsel %vm1731, %v1697, %v1262
        %v1735 = vsel %vm1731, %v1698, %v1264
        %v1736 = vsel %vm1731, %v1699, %v1266
        %v1737 = vsel %vm1731, %v1700, %v1268
        %v1738 = vsel %vm1731, %v1701, %v1270
        %v1739 = vsel %vm1731, %v1702, %v1272
        %v1740 = vsel %vm1731, %v1703, %v1274
        %v1741 = vsel %vm1731, %v1704, %v1276
        %v1742 = vsel %vm1731, %v1705, %v1278
        %v1743 = vsel %vm1731, %v1706, %v1280
        %v1744 = vsel %vm1731, %v1707, %v1282
        %v1745 = vsel %vm1731, %v1708, %v1284
        %v1746 = vsel %vm1731, %v1709, %v1286
        %v1747 = vsel %vm1731, %v1710, %v1288
        %v1748 = vsel %vm1731, %v1711, %v1290
        %v1749 = vsel %vm1731, %v1712, %v1292
        %v1750 = vsel %vm1731, %v1713, %v1294
        %v1751 = vsel %vm1731, %v1714, %v1296
        %v1752 = vsel %vm1731, %v1715, %v1298
        %v1753 = vsel %vm1731, %v1716, %v1300
        %v1754 = vsel %vm1731, %v1717, %v1302
        %v1755 = vsel %vm1731, %v1718, %v1304
        %v1756 = vsel %vm1731, %v1719, %v1306
        %v1757 = vsel %vm1731, %v1720, %v1308
        %v1758 = vsel %vm1731, %v1721, %v1310
        %v1759 = vsel %vm1731, %v1722, %v1312
        %v1760 = vsel %vm1731, %v1723, %v1314
        %v1761 = vsel %vm1731, %v1724, %v1316
        %v1762 = vsel %vm1731, %v1725, %v1318
        %v1763 = vsel %vm1731, %v1726, %v1320
        %v1764 = vsel %vm1731, %v1727, %v1322
        %v1765 = vsel %vm1731, %v1728, %v1324
        %v1766 = vsel %vm1731, %v1729, %v1326
        %v1767 = vsel %vm1731, %v1730, %v1328
        %vm1768 = vcmask 261120
        %v1769 = vsel %vm1768, %v1732, %v1402
        %v1770 = vsel %vm1768, %v1733, %v1404
        %v1771 = vsel %vm1768, %v1734, %v1406
        %v1772 = vsel %vm1768, %v1735, %v1408
        %v1773 = vsel %vm1768, %v1736, %v1410
        %v1774 = vsel %vm1768, %v1737, %v1412
        %v1775 = vsel %vm1768, %v1738, %v1414
        %v1776 = vsel %vm1768, %v1739, %v1416
        %v1777 = vsel %vm1768, %v1740, %v1418
        %v1778 = vsel %vm1768, %v1741, %v1420
        %v1779 = vsel %vm1768, %v1742, %v1422
        %v1780 = vsel %vm1768, %v1743, %v1424
        %v1781 = vsel %vm1768, %v1744, %v1426
        %v1782 = vsel %vm1768, %v1745, %v1428
        %v1783 = vsel %vm1768, %v1746, %v1430
        %v1784 = vsel %vm1768, %v1747, %v1432
        %v1785 = vsel %vm1768, %v1748, %v1434
        %v1786 = vsel %vm1768, %v1749, %v1436
        %v1787 = vsel %vm1768, %v1750, %v1438
        %v1788 = vsel %vm1768, %v1751, %v1440
        %v1789 = vsel %vm1768, %v1752, %v1442
        %v1790 = vsel %vm1768, %v1753, %v1444
        %v1791 = vsel %vm1768, %v1754, %v1446
        %v1792 = vsel %vm1768, %v1755, %v1448
        %v1793 = vsel %vm1768, %v1756, %v1450
        %v1794 = vsel %vm1768, %v1757, %v1452
        %v1795 = vsel %vm1768, %v1758, %v1454
        %v1796 = vsel %vm1768, %v1759, %v1456
        %v1797 = vsel %vm1768, %v1760, %v1458
        %v1798 = vsel %vm1768, %v1761, %v1460
        %v1799 = vsel %vm1768, %v1762, %v1462
        %v1800 = vsel %vm1768, %v1763, %v1464
        %v1801 = vsel %vm1768, %v1764, %v1466
        %v1802 = vsel %vm1768, %v1765, %v1468
        %v1803 = vsel %vm1768, %v1766, %v1470
        %v1804 = vsel %vm1768, %v1767, %v1472
        %v1805 = vld [vmem:[%s1] sm:$0xff]
        %v1806 = vld [vmem:[%s1 + $0x8] sm:$0xff]
        %v1807 = vld [vmem:[%s1 + $0x10] sm:$0xff]
        %v1808 = vld [vmem:[%s1 + $0x18] sm:$0xff]
        %v1809 = vld [vmem:[%s1 + $0x20] sm:$0xf]
        %v1810 = vld [vmem:[%s2] sm:$0x1]
        %v1812 = vlaneseq
        %v1813 = vshrl.u32 %v1812, 7
        %v1814 = vsub.s32 0, %v1813
        %v1815 = vrot.slane %v1810, %v1814
        %vm1817 = vcmask 293888
        %v1819 = vsel %vm1817, %v1769, 0
        %v1822 = vsel %vm1817, %v1770, 0
        %v1825 = vsel %vm1817, %v1771, 0
        %v1828 = vsel %vm1817, %v1772, 0
        %v1831 = vsel %vm1817, %v1773, 0
        %v1834 = vsel %vm1817, %v1774, 0
        %v1837 = vsel %vm1817, %v1775, 0
        %v1840 = vsel %vm1817, %v1776, 0
        %v1843 = vsel %vm1817, %v1777, 0
        %v1846 = vsel %vm1817, %v1778, 0
        %v1849 = vsel %vm1817, %v1779, 0
        %v1852 = vsel %vm1817, %v1780, 0
        %v1855 = vsel %vm1817, %v1781, 0
        %v1858 = vsel %vm1817, %v1782, 0
        %v1861 = vsel %vm1817, %v1783, 0
        %v1864 = vsel %vm1817, %v1784, 0
        %v1867 = vsel %vm1817, %v1785, 0
        %v1870 = vsel %vm1817, %v1786, 0
        %v1873 = vsel %vm1817, %v1787, 0
        %v1876 = vsel %vm1817, %v1788, 0
        %v1879 = vsel %vm1817, %v1789, 0
        %v1882 = vsel %vm1817, %v1790, 0
        %v1885 = vsel %vm1817, %v1791, 0
        %v1888 = vsel %vm1817, %v1792, 0
        %v1891 = vsel %vm1817, %v1793, 0
        %v1894 = vsel %vm1817, %v1794, 0
        %v1897 = vsel %vm1817, %v1795, 0
        %v1900 = vsel %vm1817, %v1796, 0
        %v1903 = vsel %vm1817, %v1797, 0
        %v1906 = vsel %vm1817, %v1798, 0
        %v1909 = vsel %vm1817, %v1799, 0
        %v1912 = vsel %vm1817, %v1800, 0
        %v1915 = vsel %vm1817, %v1801, 0
        %v1918 = vsel %vm1817, %v1802, 0
        %v1921 = vsel %vm1817, %v1803, 0
        %v1924 = vsel %vm1817, %v1804, 0
        %vm1926 = vcmask 1043456
        %v1928 = vsel %vm1926, %v1809, 0
        %1930 = vmatprep.subr.mxu0 0.0
        %1931 = vmatpush1.msra.mxu0 %v1805
        %1932 = vmatprep.subr.mxu0 0.0
        %1933 = vmatpush1.msra.mxu0 %v1806
        %1934 = vmatprep.subr.mxu0 0.0
        %1935 = vmatpush1.msra.mxu0 %v1807
        %1936 = vmatprep.subr.mxu0 0.0
        %1937 = vmatpush1.msra.mxu0 %v1808
        %1938 = vmatprep.subr.mxu0 0.0
        %1939 = vmatpush1.msra.mxu0 %v1928
        %1940 = vmatprep.subr.mxu0 0.0
        %1941 = vmatpush1.msra.mxu0 0.0
        %1942 = vmatprep.subr.mxu0 0.0
        %1943 = vmatpush1.msra.mxu0 0.0
        %1944 = vmatprep.subr.mxu0 0.0
        %1945 = vmatpush1.msra.mxu0 0.0
        %1946 = vmatprep.subr.mxu0 0.0
        %1947 = vmatpush1.msra.mxu0 0.0
        %1948 = vmatprep.subr.mxu0 0.0
        %1949 = vmatpush1.msra.mxu0 0.0
        %1950 = vmatprep.subr.mxu0 0.0
        %1951 = vmatpush1.msra.mxu0 0.0
        %1952 = vmatprep.subr.mxu0 0.0
        %1953 = vmatpush1.msra.mxu0 0.0
        %1954 = vmatprep.subr.mxu0 0.0
        %1955 = vmatpush1.msra.mxu0 0.0
        %1956 = vmatprep.subr.mxu0 0.0
        %1957 = vmatpush1.msra.mxu0 0.0
        %1958 = vmatprep.subr.mxu0 0.0
        %1959 = vmatpush1.msra.mxu0 0.0
        %1960 = vmatprep.subr.mxu0 0.0
        %1961 = vmatpush1.msra.mxu0 0.0
        %1962 = vmatprep.subr.mxu0 0.0
        %1963 = vmatpush1.msra.mxu0 0.0
        %1964 = vmatprep.subr.mxu0 0.0
        %1965 = vmatpush1.msra.mxu0 0.0
        %1966 = vmatprep.subr.mxu0 0.0
        %1967 = vmatpush1.msra.mxu0 0.0
        %1968 = vmatprep.subr.mxu0 0.0
        %1969 = vmatpush1.msra.mxu0 0.0
        %1970 = vmatprep.subr.mxu0 0.0
        %1971 = vmatpush1.msra.mxu0 0.0
        %1972 = vmatprep.subr.mxu0 0.0
        %1973 = vmatpush1.msra.mxu0 0.0
        %1974 = vmatprep.subr.mxu0 0.0
        %1975 = vmatpush1.msra.mxu0 0.0
        %1976 = vmatprep.subr.mxu0 0.0
        %1977 = vmatpush1.msra.mxu0 0.0
        %1978 = vmatprep.subr.mxu0 0.0
        %1979 = vmatpush1.msra.mxu0 0.0
        %1980 = vmatprep.subr.mxu0 0.0
        %1981 = vmatpush1.msra.mxu0 0.0
        %1982 = vmatprep.subr.mxu0 0.0
        %1983 = vmatpush1.msra.mxu0 0.0
        %1984 = vmatprep.subr.mxu0 0.0
        %1985 = vmatpush1.msra.mxu0 0.0
        %1986 = vmatprep.subr.mxu0 0.0
        %1987 = vmatpush1.msra.mxu0 0.0
        %1988 = vmatprep.subr.mxu0 0.0
        %1989 = vmatpush1.msra.mxu0 0.0
        %1990 = vmatprep.subr.mxu0 0.0
        %1991 = vmatpush1.msra.mxu0 0.0
        %1992 = vmatprep.subr.mxu0 0.0
        %1993 = vmatpush1.msra.mxu0 0.0
        %1994 = vmatprep.mubr.f32.mxu0 0.0
        %1995 = vmatmul.mubr.f32.gmra.mrb[0].mxu0 %v1819
        %v1996 = vpop.f32.mrb[0].mxu0
        %v1997 = vadd.f32 %v1815, %v1996
        %v1998 = vpop.f32.mrb[0].mxu0
        %1999 = vmatprep.mubr.f32.mxu0 0.0
        %2000 = vmatmul.mubr.f32.gmra.mrb[0].mxu0 %v1822
        %v2001 = vpop.f32.mrb[0].mxu0
        %v2002 = vadd.f32 %v1815, %v2001
        %v2003 = vpop.f32.mrb[0].mxu0
        %2004 = vmatprep.mubr.f32.mxu0 0.0
        %2005 = vmatmul.mubr.f32.gmra.mrb[0].mxu0 %v1825
        %v2006 = vpop.f32.mrb[0].mxu0
        %v2007 = vadd.f32 %v1815, %v2006
        %v2008 = vpop.f32.mrb[0].mxu0
        %2009 = vmatprep.mubr.f32.mxu0 0.0
        %2010 = vmatmul.mubr.f32.gmra.mrb[0].mxu0 %v1828
        %v2011 = vpop.f32.mrb[0].mxu0
        %v2012 = vadd.f32 %v1815, %v2011
        %v2013 = vpop.f32.mrb[0].mxu0
        %2014 = vmatprep.mubr.f32.mxu0 0.0
        %2015 = vmatmul.mubr.f32.gmra.mrb[0].mxu0 %v1831
        %v2016 = vpop.f32.mrb[0].mxu0
        %v2017 = vadd.f32 %v1815, %v2016
        %v2018 = vpop.f32.mrb[0].mxu0
        %2019 = vmatprep.mubr.f32.mxu0 0.0
        %2020 = vmatmul.mubr.f32.gmra.mrb[0].mxu0 %v1834
        %v2021 = vpop.f32.mrb[0].mxu0
        %v2022 = vadd.f32 %v1815, %v2021
        %v2023 = vpop.f32.mrb[0].mxu0
        %2024 = vmatprep.mubr.f32.mxu0 0.0
        %2025 = vmatmul.mubr.f32.gmra.mrb[0].mxu0 %v1837
        %v2026 = vpop.f32.mrb[0].mxu0
        %v2027 = vadd.f32 %v1815, %v2026
        %v2028 = vpop.f32.mrb[0].mxu0
        %2029 = vmatprep.mubr.f32.mxu0 0.0
        %2030 = vmatmul.mubr.f32.gmra.mrb[0].mxu0 %v1840
        %v2031 = vpop.f32.mrb[0].mxu0
        %v2032 = vadd.f32 %v1815, %v2031
        %v2033 = vpop.f32.mrb[0].mxu0
        %2034 = vmatprep.mubr.f32.mxu0 0.0
        %2035 = vmatmul.mubr.f32.gmra.mrb[0].mxu0 %v1843
        %v2036 = vpop.f32.mrb[0].mxu0
        %v2037 = vadd.f32 %v1815, %v2036
        %v2038 = vpop.f32.mrb[0].mxu0
        %2039 = vmatprep.mubr.f32.mxu0 0.0
        %2040 = vmatmul.mubr.f32.gmra.mrb[0].mxu0 %v1846
        %v2041 = vpop.f32.mrb[0].mxu0
        %v2042 = vadd.f32 %v1815, %v2041
        %v2043 = vpop.f32.mrb[0].mxu0
        %2044 = vmatprep.mubr.f32.mxu0 0.0
        %2045 = vmatmul.mubr.f32.gmra.mrb[0].mxu0 %v1849
        %v2046 = vpop.f32.mrb[0].mxu0
        %v2047 = vadd.f32 %v1815, %v2046
        %v2048 = vpop.f32.mrb[0].mxu0
        %2049 = vmatprep.mubr.f32.mxu0 0.0
        %2050 = vmatmul.mubr.f32.gmra.mrb[0].mxu0 %v1852
        %v2051 = vpop.f32.mrb[0].mxu0
        %v2052 = vadd.f32 %v1815, %v2051
        %v2053 = vpop.f32.mrb[0].mxu0
        %2054 = vmatprep.mubr.f32.mxu0 0.0
        %2055 = vmatmul.mubr.f32.gmra.mrb[0].mxu0 %v1855
        %v2056 = vpop.f32.mrb[0].mxu0
        %v2057 = vadd.f32 %v1815, %v2056
        %v2058 = vpop.f32.mrb[0].mxu0
        %2059 = vmatprep.mubr.f32.mxu0 0.0
        %2060 = vmatmul.mubr.f32.gmra.mrb[0].mxu0 %v1858
        %v2061 = vpop.f32.mrb[0].mxu0
        %v2062 = vadd.f32 %v1815, %v2061
        %v2063 = vpop.f32.mrb[0].mxu0
        %2064 = vmatprep.mubr.f32.mxu0 0.0
        %2065 = vmatmul.mubr.f32.gmra.mrb[0].mxu0 %v1861
        %v2066 = vpop.f32.mrb[0].mxu0
        %v2067 = vadd.f32 %v1815, %v2066
        %v2068 = vpop.f32.mrb[0].mxu0
        %2069 = vmatprep.mubr.f32.mxu0 0.0
        %2070 = vmatmul.mubr.f32.gmra.mrb[0].mxu0 %v1864
        %v2071 = vpop.f32.mrb[0].mxu0
        %v2072 = vadd.f32 %v1815, %v2071
        %v2073 = vpop.f32.mrb[0].mxu0
        %2074 = vmatprep.mubr.f32.mxu0 0.0
        %2075 = vmatmul.mubr.f32.gmra.mrb[0].mxu0 %v1867
        %v2076 = vpop.f32.mrb[0].mxu0
        %v2077 = vadd.f32 %v1815, %v2076
        %v2078 = vpop.f32.mrb[0].mxu0
        %2079 = vmatprep.mubr.f32.mxu0 0.0
        %2080 = vmatmul.mubr.f32.gmra.mrb[0].mxu0 %v1870
        %v2081 = vpop.f32.mrb[0].mxu0
        %v2082 = vadd.f32 %v1815, %v2081
        %v2083 = vpop.f32.mrb[0].mxu0
        %2084 = vmatprep.mubr.f32.mxu0 0.0
        %2085 = vmatmul.mubr.f32.gmra.mrb[0].mxu0 %v1873
        %v2086 = vpop.f32.mrb[0].mxu0
        %v2087 = vadd.f32 %v1815, %v2086
        %v2088 = vpop.f32.mrb[0].mxu0
        %2089 = vmatprep.mubr.f32.mxu0 0.0
        %2090 = vmatmul.mubr.f32.gmra.mrb[0].mxu0 %v1876
        %v2091 = vpop.f32.mrb[0].mxu0
        %v2092 = vadd.f32 %v1815, %v2091
        %v2093 = vpop.f32.mrb[0].mxu0
        %2094 = vmatprep.mubr.f32.mxu0 0.0
        %2095 = vmatmul.mubr.f32.gmra.mrb[0].mxu0 %v1879
        %v2096 = vpop.f32.mrb[0].mxu0
        %v2097 = vadd.f32 %v1815, %v2096
        %v2098 = vpop.f32.mrb[0].mxu0
        %2099 = vmatprep.mubr.f32.mxu0 0.0
        %2100 = vmatmul.mubr.f32.gmra.mrb[0].mxu0 %v1882
        %v2101 = vpop.f32.mrb[0].mxu0
        %v2102 = vadd.f32 %v1815, %v2101
        %v2103 = vpop.f32.mrb[0].mxu0
        %2104 = vmatprep.mubr.f32.mxu0 0.0
        %2105 = vmatmul.mubr.f32.gmra.mrb[0].mxu0 %v1885
        %v2106 = vpop.f32.mrb[0].mxu0
        %v2107 = vadd.f32 %v1815, %v2106
        %v2108 = vpop.f32.mrb[0].mxu0
        %2109 = vmatprep.mubr.f32.mxu0 0.0
        %2110 = vmatmul.mubr.f32.gmra.mrb[0].mxu0 %v1888
        %v2111 = vpop.f32.mrb[0].mxu0
        %v2112 = vadd.f32 %v1815, %v2111
        %v2113 = vpop.f32.mrb[0].mxu0
        %2114 = vmatprep.mubr.f32.mxu0 0.0
        %2115 = vmatmul.mubr.f32.gmra.mrb[0].mxu0 %v1891
        %v2116 = vpop.f32.mrb[0].mxu0
        %v2117 = vadd.f32 %v1815, %v2116
        %v2118 = vpop.f32.mrb[0].mxu0
        %2119 = vmatprep.mubr.f32.mxu0 0.0
        %2120 = vmatmul.mubr.f32.gmra.mrb[0].mxu0 %v1894
        %v2121 = vpop.f32.mrb[0].mxu0
        %v2122 = vadd.f32 %v1815, %v2121
        %v2123 = vpop.f32.mrb[0].mxu0
        %2124 = vmatprep.mubr.f32.mxu0 0.0
        %2125 = vmatmul.mubr.f32.gmra.mrb[0].mxu0 %v1897
        %v2126 = vpop.f32.mrb[0].mxu0
        %v2127 = vadd.f32 %v1815, %v2126
        %v2128 = vpop.f32.mrb[0].mxu0
        %2129 = vmatprep.mubr.f32.mxu0 0.0
        %2130 = vmatmul.mubr.f32.gmra.mrb[0].mxu0 %v1900
        %v2131 = vpop.f32.mrb[0].mxu0
        %v2132 = vadd.f32 %v1815, %v2131
        %v2133 = vpop.f32.mrb[0].mxu0
        %2134 = vmatprep.mubr.f32.mxu0 0.0
        %2135 = vmatmul.mubr.f32.gmra.mrb[0].mxu0 %v1903
        %v2136 = vpop.f32.mrb[0].mxu0
        %v2137 = vadd.f32 %v1815, %v2136
        %v2138 = vpop.f32.mrb[0].mxu0
        %2139 = vmatprep.mubr.f32.mxu0 0.0
        %2140 = vmatmul.mubr.f32.gmra.mrb[0].mxu0 %v1906
        %v2141 = vpop.f32.mrb[0].mxu0
        %v2142 = vadd.f32 %v1815, %v2141
        %v2143 = vpop.f32.mrb[0].mxu0
        %2144 = vmatprep.mubr.f32.mxu0 0.0
        %2145 = vmatmul.mubr.f32.gmra.mrb[0].mxu0 %v1909
        %v2146 = vpop.f32.mrb[0].mxu0
        %v2147 = vadd.f32 %v1815, %v2146
        %v2148 = vpop.f32.mrb[0].mxu0
        %2149 = vmatprep.mubr.f32.mxu0 0.0
        %2150 = vmatmul.mubr.f32.gmra.mrb[0].mxu0 %v1912
        %v2151 = vpop.f32.mrb[0].mxu0
        %v2152 = vadd.f32 %v1815, %v2151
        %v2153 = vpop.f32.mrb[0].mxu0
        %2154 = vmatprep.mubr.f32.mxu0 0.0
        %2155 = vmatmul.mubr.f32.gmra.mrb[0].mxu0 %v1915
        %v2156 = vpop.f32.mrb[0].mxu0
        %v2157 = vadd.f32 %v1815, %v2156
        %v2158 = vpop.f32.mrb[0].mxu0
        %2159 = vmatprep.mubr.f32.mxu0 0.0
        %2160 = vmatmul.mubr.f32.gmra.mrb[0].mxu0 %v1918
        %v2161 = vpop.f32.mrb[0].mxu0
        %v2162 = vadd.f32 %v1815, %v2161
        %v2163 = vpop.f32.mrb[0].mxu0
        %2164 = vmatprep.mubr.f32.mxu0 0.0
        %2165 = vmatmul.mubr.f32.gmra.mrb[0].mxu0 %v1921
        %v2166 = vpop.f32.mrb[0].mxu0
        %v2167 = vadd.f32 %v1815, %v2166
        %v2168 = vpop.f32.mrb[0].mxu0
        %2169 = vmatprep.mubr.f32.mxu0 0.0
        %2170 = vmatmul.mubr.f32.gmra.mrb[0].mxu0 %v1924
        %v2171 = vpop.f32.mrb[0].mxu0
        %v2172 = vadd.f32 %v1815, %v2171
        %v2173 = vpop.f32.mrb[0].mxu0
        %2174 = vdwg.mxu0
        %vm2175 = vcmp.ge.f32.partialorder %v1997, 0.0
        %vm2176 = vcmp.ge.f32.partialorder %v2002, 0.0
        %vm2177 = vcmp.ge.f32.partialorder %v2007, 0.0
        %vm2178 = vcmp.ge.f32.partialorder %v2012, 0.0
        %vm2179 = vcmp.ge.f32.partialorder %v2017, 0.0
        %vm2180 = vcmp.ge.f32.partialorder %v2022, 0.0
        %vm2181 = vcmp.ge.f32.partialorder %v2027, 0.0
        %vm2182 = vcmp.ge.f32.partialorder %v2032, 0.0
        %vm2183 = vcmp.ge.f32.partialorder %v2037, 0.0
        %vm2184 = vcmp.ge.f32.partialorder %v2042, 0.0
        %vm2185 = vcmp.ge.f32.partialorder %v2047, 0.0
        %vm2186 = vcmp.ge.f32.partialorder %v2052, 0.0
        %vm2187 = vcmp.ge.f32.partialorder %v2057, 0.0
        %vm2188 = vcmp.ge.f32.partialorder %v2062, 0.0
        %vm2189 = vcmp.ge.f32.partialorder %v2067, 0.0
        %vm2190 = vcmp.ge.f32.partialorder %v2072, 0.0
        %vm2191 = vcmp.ge.f32.partialorder %v2077, 0.0
        %vm2192 = vcmp.ge.f32.partialorder %v2082, 0.0
        %vm2193 = vcmp.ge.f32.partialorder %v2087, 0.0
        %vm2194 = vcmp.ge.f32.partialorder %v2092, 0.0
        %vm2195 = vcmp.ge.f32.partialorder %v2097, 0.0
        %vm2196 = vcmp.ge.f32.partialorder %v2102, 0.0
        %vm2197 = vcmp.ge.f32.partialorder %v2107, 0.0
        %vm2198 = vcmp.ge.f32.partialorder %v2112, 0.0
        %vm2199 = vcmp.ge.f32.partialorder %v2117, 0.0
        %vm2200 = vcmp.ge.f32.partialorder %v2122, 0.0
        %vm2201 = vcmp.ge.f32.partialorder %v2127, 0.0
        %vm2202 = vcmp.ge.f32.partialorder %v2132, 0.0
        %vm2203 = vcmp.ge.f32.partialorder %v2137, 0.0
        %vm2204 = vcmp.ge.f32.partialorder %v2142, 0.0
        %vm2205 = vcmp.ge.f32.partialorder %v2147, 0.0
        %vm2206 = vcmp.ge.f32.partialorder %v2152, 0.0
        %vm2207 = vcmp.ge.f32.partialorder %v2157, 0.0
        %vm2208 = vcmp.ge.f32.partialorder %v2162, 0.0
        %vm2209 = vcmp.ge.f32.partialorder %v2167, 0.0
        %vm2210 = vcmp.ge.f32.partialorder %v2172, 0.0
        %v2211 = vmul.f32 %v1997, 0.01
        %v2212 = vmul.f32 %v2002, 0.01
        %v2213 = vmul.f32 %v2007, 0.01
        %v2214 = vmul.f32 %v2012, 0.01
        %v2215 = vmul.f32 %v2017, 0.01
        %v2216 = vmul.f32 %v2022, 0.01
        %v2217 = vmul.f32 %v2027, 0.01
        %v2218 = vmul.f32 %v2032, 0.01
        %v2219 = vmul.f32 %v2037, 0.01
        %v2220 = vmul.f32 %v2042, 0.01
        %v2221 = vmul.f32 %v2047, 0.01
        %v2222 = vmul.f32 %v2052, 0.01
        %v2223 = vmul.f32 %v2057, 0.01
        %v2224 = vmul.f32 %v2062, 0.01
        %v2225 = vmul.f32 %v2067, 0.01
        %v2226 = vmul.f32 %v2072, 0.01
        %v2227 = vmul.f32 %v2077, 0.01
        %v2228 = vmul.f32 %v2082, 0.01
        %v2229 = vmul.f32 %v2087, 0.01
        %v2230 = vmul.f32 %v2092, 0.01
        %v2231 = vmul.f32 %v2097, 0.01
        %v2232 = vmul.f32 %v2102, 0.01
        %v2233 = vmul.f32 %v2107, 0.01
        %v2234 = vmul.f32 %v2112, 0.01
        %v2235 = vmul.f32 %v2117, 0.01
        %v2236 = vmul.f32 %v2122, 0.01
        %v2237 = vmul.f32 %v2127, 0.01
        %v2238 = vmul.f32 %v2132, 0.01
        %v2239 = vmul.f32 %v2137, 0.01
        %v2240 = vmul.f32 %v2142, 0.01
        %v2241 = vmul.f32 %v2147, 0.01
        %v2242 = vmul.f32 %v2152, 0.01
        %v2243 = vmul.f32 %v2157, 0.01
        %v2244 = vmul.f32 %v2162, 0.01
        %v2245 = vmul.f32 %v2167, 0.01
        %v2246 = vmul.f32 %v2172, 0.01
        %v2247 = vsel %vm2175, %v1997, %v2211
        %v2248 = vsel %vm2176, %v2002, %v2212
        %v2249 = vsel %vm2177, %v2007, %v2213
        %v2250 = vsel %vm2178, %v2012, %v2214
        %v2251 = vsel %vm2179, %v2017, %v2215
        %v2252 = vsel %vm2180, %v2022, %v2216
        %v2253 = vsel %vm2181, %v2027, %v2217
        %v2254 = vsel %vm2182, %v2032, %v2218
        %v2255 = vsel %vm2183, %v2037, %v2219
        %v2256 = vsel %vm2184, %v2042, %v2220
        %v2257 = vsel %vm2185, %v2047, %v2221
        %v2258 = vsel %vm2186, %v2052, %v2222
        %v2259 = vsel %vm2187, %v2057, %v2223
        %v2260 = vsel %vm2188, %v2062, %v2224
        %v2261 = vsel %vm2189, %v2067, %v2225
        %v2262 = vsel %vm2190, %v2072, %v2226
        %v2263 = vsel %vm2191, %v2077, %v2227
        %v2264 = vsel %vm2192, %v2082, %v2228
        %v2265 = vsel %vm2193, %v2087, %v2229
        %v2266 = vsel %vm2194, %v2092, %v2230
        %v2267 = vsel %vm2195, %v2097, %v2231
        %v2268 = vsel %vm2196, %v2102, %v2232
        %v2269 = vsel %vm2197, %v2107, %v2233
        %v2270 = vsel %vm2198, %v2112, %v2234
        %v2271 = vsel %vm2199, %v2117, %v2235
        %v2272 = vsel %vm2200, %v2122, %v2236
        %v2273 = vsel %vm2201, %v2127, %v2237
        %v2274 = vsel %vm2202, %v2132, %v2238
        %v2275 = vsel %vm2203, %v2137, %v2239
        %v2276 = vsel %vm2204, %v2142, %v2240
        %v2277 = vsel %vm2205, %v2147, %v2241
        %v2278 = vsel %vm2206, %v2152, %v2242
        %v2279 = vsel %vm2207, %v2157, %v2243
        %v2280 = vsel %vm2208, %v2162, %v2244
        %v2281 = vsel %vm2209, %v2167, %v2245
        %v2282 = vsel %vm2210, %v2172, %v2246
        %2283 = vst [vmem:[%s163] sm:$0xff] %v2247
        %2284 = vst [vmem:[%s163 + $0x8] sm:$0xff] %v2248
        %2285 = vst [vmem:[%s163 + $0x10] sm:$0xff] %v2249
        %2286 = vst [vmem:[%s163 + $0x18] sm:$0xff] %v2250
        %2287 = vst [vmem:[%s163 + $0x20] sm:$0xff] %v2251
        %2288 = vst [vmem:[%s163 + $0x28] sm:$0xff] %v2252
        %2289 = vst [vmem:[%s163 + $0x30] sm:$0xff] %v2253
        %2290 = vst [vmem:[%s163 + $0x38] sm:$0xff] %v2254
        %2291 = vst [vmem:[%s163 + $0x40] sm:$0xff] %v2255
        %2292 = vst [vmem:[%s163 + $0x48] sm:$0xff] %v2256
        %2293 = vst [vmem:[%s163 + $0x50] sm:$0xff] %v2257
        %2294 = vst [vmem:[%s163 + $0x58] sm:$0xff] %v2258
        %2295 = vst [vmem:[%s163 + $0x60] sm:$0xff] %v2259
        %2296 = vst [vmem:[%s163 + $0x68] sm:$0xff] %v2260
        %2297 = vst [vmem:[%s163 + $0x70] sm:$0xff] %v2261
        %2298 = vst [vmem:[%s163 + $0x78] sm:$0xff] %v2262
        %2299 = vst [vmem:[%s163 + $0x80] sm:$0xff] %v2263
        %2300 = vst [vmem:[%s163 + $0x88] sm:$0xff] %v2264
        %2301 = vst [vmem:[%s163 + $0x90] sm:$0xff] %v2265
        %2302 = vst [vmem:[%s163 + $0x98] sm:$0xff] %v2266
        %2303 = vst [vmem:[%s163 + $0xa0] sm:$0xff] %v2267
        %2304 = vst [vmem:[%s163 + $0xa8] sm:$0xff] %v2268
        %2305 = vst [vmem:[%s163 + $0xb0] sm:$0xff] %v2269
        %2306 = vst [vmem:[%s163 + $0xb8] sm:$0xff] %v2270
        %2307 = vst [vmem:[%s163 + $0xc0] sm:$0xff] %v2271
        %2308 = vst [vmem:[%s163 + $0xc8] sm:$0xff] %v2272
        %2309 = vst [vmem:[%s163 + $0xd0] sm:$0xff] %v2273
        %2310 = vst [vmem:[%s163 + $0xd8] sm:$0xff] %v2274
        %2311 = vst [vmem:[%s163 + $0xe0] sm:$0xff] %v2275
        %2312 = vst [vmem:[%s163 + $0xe8] sm:$0xff] %v2276
        %2313 = vst [vmem:[%s163 + $0xf0] sm:$0xff] %v2277
        %2314 = vst [vmem:[%s163 + $0xf8] sm:$0xff] %v2278
        %2315 = vst [vmem:[%s163 + $0x100] sm:$0xff] %v2279
        %2316 = vst [vmem:[%s163 + $0x108] sm:$0xff] %v2280
        %2317 = vst [vmem:[%s163 + $0x110] sm:$0xff] %v2281
        %2318 = vst [vmem:[%s163 + $0x118] sm:$0xff] %v2282
        %s2319 = sand.u32 %s93, 1
        %s2320 = scalar_lea.sflag [#allocation3], %s2319
        %s2321 = sand.u32 %s93, 1
        %s2322 = smul.addr %s2321, 288
        %s2323 = scalar_lea.vmem [#allocation2], %s2322
        // Predicated region
        $region33: #{tpu_custom_call.1} parent=31 // pred_check
          %p2324 = pneg %p103
        $region34: #{tpu_custom_call.1} parent=31 // pred_check_branch
          %2326 = sbr.rel (%p2324) target = $region36
        $region35: #{tpu_custom_call.1} parent=31 // pred_region
          %s2328 = ssub.s32 4608, 4608
          %2329 = vsyncadd %s2320, %s2328
          %s2330 = smul.addr %s17, 36
          %s2331 = smul.addr %s2330, 128
          %s2332 = scalar_lea.hbm %s3, %s2331
          %s2333 = sshll.u32 %s2323, 4
          %s2334 = int_to_ptr.vmem [resolvable:$true] %s2333
          %2339 = dma.vmem_to_hbm [thread:$0]  %s2334, 4608, %s2332, %s2320, 128, 128, 8
        $region36: #{tpu_custom_call.1} parent=31 // pred_fallthru
          _
      $region32: #{tpu_custom_call.1} parent=5 // pred_fallthru
        _
      %p2340 = scmp.le.s32.totalorder 2, %s12
      // Predicated region
      $region37: #{tpu_custom_call.1} parent=5 // pred_check
        %p2341 = pneg %p2340
      $region38: #{tpu_custom_call.1} parent=5 // pred_check_branch
        %2343 = sbr.rel (%p2341) target = $region40
      $region39: #{tpu_custom_call.1} parent=5 // pred_region
        %s2344 = ssub.s32 %s12, 2
        // Predicated region
        $region41: #{tpu_custom_call.1} parent=39 // pred_check
          %p2345 = pneg %p109
        $region42: #{tpu_custom_call.1} parent=39 // pred_check_branch
          %2347 = sbr.rel (%p2345) target = $region44
        $region43: #{tpu_custom_call.1} parent=39 // pred_region
          %s2348 = sand.u32 %s94, 1
          %s2349 = scalar_lea.sflag [#allocation3], %s2348
          %s2350 = sand.u32 %s94, 1
          %s2351 = smul.addr %s2350, 288
          %s2352 = scalar_lea.vmem [#allocation2], %s2351
          %2353 = dma.done %s2349, 4608
        $region44: #{tpu_custom_call.1} parent=39 // pred_fallthru
          _
      $region40: #{tpu_custom_call.1} parent=5 // pred_fallthru
        _
    $region6: #{tpu_custom_call.1} parent=1 // loop_footer
      %s16 = sadd.s32 1, %s12
    $region7: #{tpu_custom_call.1} parent=1 // loop_footer_branch
      %11 = sbr.rel target = $region3
    $region8: #{tpu_custom_call.1} parent=1 // loop_exit
      _
    %2354 = vsyncpa [#allocation3], 1
    %s2355 = scalar_lea.sflag [#allocation3], 1
    %2356 = vsyncpa %s2355, 1

</llo_original>
